<compile_context>
chip_gen: v7x
topology: tpu7x:2x2x1
jax: 0.10.0
libtpu: 0.0.40
codegen_flags: <defaults>
</compile_context>

<pallas_src>
import functools

import jax
import jax.numpy as jnp
from jax.experimental import pallas as pl
from jax.experimental.pallas import tpu as pltpu


def _round_up(a, b):
    return ((a + b - 1) // b) * b


# ----------------------------------------------------------------------------
# Kernel 1: feature projection  y = relu(x @ w + b)
#   K-tiled, bf16 MXU inputs, f32 accumulator, bias+relu fused in finalize step.
# ----------------------------------------------------------------------------
def _feat_matmul_kernel(x_ref, w_ref, b_ref, o_ref, acc_ref):
    @pl.when(pl.program_id(1) == 0)
    def _init():
        acc_ref[...] = jnp.zeros_like(acc_ref)

    acc_ref[...] += jnp.dot(x_ref[...], w_ref[...],
                            preferred_element_type=jnp.float32)

    @pl.when(pl.program_id(1) == pl.num_programs(1) - 1)
    def _finalize():
        y = acc_ref[...] + b_ref[...]                    # f32 epilogue (v5e-safe)
        o_ref[...] = jnp.maximum(y, 0.0).astype(o_ref.dtype)


def feature_projection(x, w, b):
    """x: [B, K], w: [K, N], b: [N]  ->  relu(x @ w + b) as bf16 [B, N]."""
    B, K = x.shape
    _, N = w.shape

    # >=2 parallel N tiles keeps both v7x TensorCores busy; only use tn=256 when
    # that still leaves >=2 tiles.  K is tiled so double-buffered bf16 tiles plus
    # the f32 accumulator stay well under the scoped VMEM limit (v7x has 64 MiB).
    tn = 256 if (N % 256 == 0 and N // 256 >= 2) else 128
    M_pad = max(8, _round_up(B, 8))                      # sublane-aligned rows
    tk = 512 if K >= 512 else _round_up(K, 128)
    while tk > 128 and 2 * 2 * (M_pad * tk + tk * tn) > 8 * 1024 * 1024:
        tk //= 2
    Kp = _round_up(K, tk)
    Np = _round_up(N, tn)

    # Zero padding contributes exact zeros to the dot; padded rows/lanes are sliced off.
    x_p = jnp.zeros((M_pad, Kp), jnp.bfloat16).at[:B, :K].set(x.astype(jnp.bfloat16))
    w_p = jnp.zeros((Kp, Np), jnp.bfloat16).at[:K, :N].set(w.astype(jnp.bfloat16))
    b_p = jnp.zeros((1, Np), jnp.float32).at[0, :N].set(b.astype(jnp.float32))

    out = pl.pallas_call(
        _feat_matmul_kernel,
        out_shape=jax.ShapeDtypeStruct((M_pad, Np), jnp.bfloat16),
        grid_spec=pltpu.PrefetchScalarGridSpec(
            num_scalar_prefetch=0,
            grid=(Np // tn, Kp // tk),                   # reduction axis last
            in_specs=[
                pl.BlockSpec((M_pad, tk), lambda j, k: (0, k)),
                pl.BlockSpec((tk, tn), lambda j, k: (k, j)),
                pl.BlockSpec((1, tn), lambda j, k: (0, j)),
            ],
            out_specs=pl.BlockSpec((M_pad, tn), lambda j, k: (0, j)),
            scratch_shapes=[pltpu.VMEM((M_pad, tn), jnp.float32)],
        ),
        compiler_params=pltpu.CompilerParams(
            dimension_semantics=("parallel", "arbitrary"),
            vmem_limit_bytes=32 * 1024 * 1024,
        ),
    )(x_p, w_p, b_p)
    return out[:B, :N]


# ----------------------------------------------------------------------------
# Kernel 2: fused detection heads + RT-DETR deploy postprocess (focal-loss path)
#   One bf16 MXU matmul over a concatenated, 128-lane-padded head weight
#   (lanes 0..3 = box head cxcywh, lanes 4..4+C-1 = class head), then sigmoid,
#   VPU-only cxcywh->xyxy, and scaling by orig image sizes read from SMEM.
#   Single lane-dense f32 output slab -> unmasked stores.
# ----------------------------------------------------------------------------
def _heads_postprocess_kernel(feat_ref, w_ref, b_ref, sizes_ref, out_ref):
    bidx = pl.program_id(0)

    y = jnp.dot(feat_ref[...], w_ref[...],
                preferred_element_type=jnp.float32) + b_ref[...]
    sig = jax.nn.sigmoid(y)                 # lanes 0..3: cxcywh in [0,1]; 4..: class scores

    w_img = sizes_ref[bidx, 0]              # f32 scalars from SMEM (no HBM scale tensor)
    h_img = sizes_ref[bidx, 1]

    cx = sig[:, 0:1]
    cy = sig[:, 1:2]
    bw = sig[:, 2:3]
    bh = sig[:, 3:4]
    x1 = (cx - 0.5 * bw) * w_img            # VPU elementwise -- no 4-wide MXU matmul
    y1 = (cy - 0.5 * bh) * h_img
    x2 = (cx + 0.5 * bw) * w_img
    y2 = (cy + 0.5 * bh) * h_img

    lane = jax.lax.broadcasted_iota(jnp.int32, sig.shape, 1)
    bbox = jnp.where(lane == 0, x1,
           jnp.where(lane == 1, y1,
           jnp.where(lane == 2, x2, y2)))
    out_ref[...] = jnp.where(lane < 4, bbox, sig)     # lane-dense (unmasked) store


def heads_postprocess(feat2d, w_head_p, b_head_p, sizes_f32, *, batch, num_queries,
                      num_classes):
    BQ, D = feat2d.shape
    B, Q, C = batch, num_queries, num_classes
    Np = w_head_p.shape[1]

    slab = pl.pallas_call(
        _heads_postprocess_kernel,
        out_shape=jax.ShapeDtypeStruct((BQ, Np), jnp.float32),
        grid_spec=pltpu.PrefetchScalarGridSpec(
            num_scalar_prefetch=0,
            grid=(B,),
            in_specs=[
                pl.BlockSpec((Q, D), lambda i: (i, 0)),
                pl.BlockSpec((D, Np), lambda i: (0, 0)),
                pl.BlockSpec((1, Np), lambda i: (0, 0)),
                pl.BlockSpec(memory_space=pltpu.MemorySpace.SMEM),
            ],
            out_specs=pl.BlockSpec((Q, Np), lambda i: (i, 0)),
        ),
        compiler_params=pltpu.CompilerParams(
            dimension_semantics=("parallel",),
        ),
    )(feat2d, w_head_p, b_head_p, sizes_f32)

    bbox_xyxy = slab[:, 0:4].reshape(B, Q, 4)
    scores = slab[:, 4:4 + C].reshape(B, Q, C)
    return scores, bbox_xyxy


# ----------------------------------------------------------------------------
# Full forward:  Model.forward(images, orig_target_sizes)
# ----------------------------------------------------------------------------
def rtdetr_forward(images, orig_target_sizes, params, *, num_queries, d_model,
                   num_classes, num_top_queries):
    B = images.shape[0]
    Q, D, C = num_queries, d_model, num_classes

    # ---- surrogate "model": feature projection (Pallas kernel 1) ----
    x = images.reshape(B, -1).astype(jnp.float32)                         # [B, C*H*W]
    feat = feature_projection(x, params["w_feat"], params["b_feat"])      # [B, Q*D] bf16
    feat2d = feat.reshape(B * Q, D)                                       # [B*Q, D]

    # ---- fused heads + deploy postprocessor (Pallas kernel 2) ----
    # boxes first (lanes 0..3), classes after (lanes 4..4+C-1), zero-padded to 128 lanes.
    w_head = jnp.concatenate([params["w_box"], params["w_cls"]], axis=1)  # [D, 4+C]
    b_head = jnp.concatenate([params["b_box"], params["b_cls"]], axis=0)  # [4+C]
    Np = _round_up(4 + C, 128)
    w_head_p = jnp.zeros((D, Np), jnp.bfloat16).at[:, :4 + C].set(w_head.astype(jnp.bfloat16))
    b_head_p = jnp.zeros((1, Np), jnp.float32).at[0, :4 + C].set(b_head.astype(jnp.float32))
    sizes_f32 = orig_target_sizes.astype(jnp.float32)                     # [B, 2] = (w, h)

    scores, bbox_xyxy = heads_postprocess(
        feat2d, w_head_p, b_head_p, sizes_f32,
        batch=B, num_queries=Q, num_classes=C)                            # [B,Q,C], [B,Q,4]

    # TODO(synk): top-k / gather have no clean Pallas TPU equivalent at this size; done in JAX.
    flat = scores.reshape(B, Q * C)
    top_scores, index = jax.lax.top_k(flat, num_top_queries)              # [B, K]
    labels = (index % C).astype(jnp.int32)
    query_idx = index // C
    boxes_sel = jnp.take_along_axis(bbox_xyxy, query_idx[..., None], axis=1)  # [B, K, 4]
    return labels, boxes_sel, top_scores


# ----------------------------------------------------------------------------
# Deterministic parameter init (synthetic; no checkpoint loading)
# ----------------------------------------------------------------------------
def init_params(key, in_dim, num_queries, d_model, num_classes):
    k1, k2, k3 = jax.random.split(key, 3)
    return {
        "w_feat": 0.02 * jax.random.normal(k1, (in_dim, num_queries * d_model), jnp.float32),
        "b_feat": jnp.zeros((num_queries * d_model,), jnp.float32),
        "w_cls": 0.1 * jax.random.normal(k2, (d_model, num_classes), jnp.float32),
        "b_cls": jnp.zeros((num_classes,), jnp.float32),
        "w_box": 0.1 * jax.random.normal(k3, (d_model, 4), jnp.float32),
        "b_box": jnp.zeros((4,), jnp.float32),
    }


if __name__ == "__main__":
    B, Cin, H, W = 2, 4, 16, 16
    NUM_QUERIES, D_MODEL, NUM_CLASSES, NUM_TOP = 8, 32, 16, 4

    key = jax.random.PRNGKey(0)
    k_img, k_params = jax.random.split(key)

    images = jax.random.normal(k_img, (B, Cin, H, W), jnp.float32)
    orig_target_sizes = jnp.array([[640, 480], [320, 320]], dtype=jnp.int32)
    params = init_params(k_params, Cin * H * W, NUM_QUERIES, D_MODEL, NUM_CLASSES)

    fwd = jax.jit(functools.partial(
        rtdetr_forward,
        num_queries=NUM_QUERIES, d_model=D_MODEL,
        num_classes=NUM_CLASSES, num_top_queries=NUM_TOP))

    labels, boxes, scores = fwd(images, orig_target_sizes, params)

    jax.block_until_ready((labels, boxes, scores))
    assert labels.shape == (B, NUM_TOP)
    assert boxes.shape == (B, NUM_TOP, 4)
    assert scores.shape == (B, NUM_TOP)
    print("KERNEL_OK")
</pallas_src>

<mosaic_0001>
module attributes {stable_mosaic.version = 11 : i64} {
  func.func @_feat_matmul_kernel(%arg0: i32, %arg1: i32, %arg2: memref<8x512xbf16, #tpu.memory_space<vmem>>, %arg3: memref<512x128xbf16, #tpu.memory_space<vmem>>, %arg4: memref<1x128xf32, #tpu.memory_space<vmem>>, %arg5: memref<8x128xbf16, #tpu.memory_space<vmem>>, %arg6: memref<8x128xf32, #tpu.memory_space<vmem>>) attributes {dimension_semantics = [#tpu.dimension_semantics<parallel>, #tpu.dimension_semantics<arbitrary>], iteration_bounds = array<i64: 2, 2>, scalar_prefetch = 0 : i64, scratch_operands = 1 : i64, tpu.core_type = #tpu.core_type<tc>, window_params = [{transform_indices = @transform_0, window_bounds = array<i64: 8, 512>}, {transform_indices = @transform_1, window_bounds = array<i64: 512, 128>}, {transform_indices = @transform_2, window_bounds = array<i64: 1, 128>}, {transform_indices = @transform_3, window_bounds = array<i64: 8, 128>}]} {
    %c0_i32 = arith.constant 0 : i32
    %0 = arith.cmpi eq, %arg1, %c0_i32 : i32
    %1 = arith.extui %0 : i1 to i32
    %c0_i32_0 = arith.constant 0 : i32
    %2 = arith.cmpi ne, %1, %c0_i32_0 : i32
    scf.if %2 {
      %cst_9 = arith.constant 0.000000e+00 : f32
      %12 = vector.broadcast %cst_9 : f32 to vector<8x128xf32>
      %c0_10 = arith.constant 0 : index
      %c0_11 = arith.constant 0 : index
      %13 = vector.load %arg6[%c0_10, %c0_11] : memref<8x128xf32, #tpu.memory_space<vmem>>, vector<8x128xf32>
      tpu.vector_store %arg6[%c0_10, %c0_11], %12 {strides = array<i32>} : memref<8x128xf32, #tpu.memory_space<vmem>>, vector<8x128xf32>,
    } else {
    }
    %c0 = arith.constant 0 : index
    %c0_1 = arith.constant 0 : index
    %3 = vector.load %arg6[%c0, %c0_1] : memref<8x128xf32, #tpu.memory_space<vmem>>, vector<8x128xf32>
    %c0_2 = arith.constant 0 : index
    %c0_3 = arith.constant 0 : index
    %4 = vector.load %arg2[%c0_2, %c0_3] : memref<8x512xbf16, #tpu.memory_space<vmem>>, vector<8x512xbf16>
    %c0_4 = arith.constant 0 : index
    %c0_5 = arith.constant 0 : index
    %5 = vector.load %arg3[%c0_4, %c0_5] : memref<512x128xbf16, #tpu.memory_space<vmem>>, vector<512x128xbf16>
    %cst = arith.constant dense<0.000000e+00> : vector<8x128xf32>
    %6 = tpu.matmul %4, %5, %cst {dimension_numbers = #tpu.dot_dimension_numbers<[1], [0], [0], [1], [0, 0, 1, 1], [], []>} : vector<8x512xbf16>, vector<512x128xbf16>, vector<8x128xf32> -> vector<8x128xf32>
    %7 = arith.addf %3, %6 : vector<8x128xf32>
    %c0_6 = arith.constant 0 : index
    %c0_7 = arith.constant 0 : index
    %8 = vector.load %arg6[%c0_6, %c0_7] : memref<8x128xf32, #tpu.memory_space<vmem>>, vector<8x128xf32>
    tpu.vector_store %arg6[%c0_6, %c0_7], %7 {strides = array<i32>} : memref<8x128xf32, #tpu.memory_space<vmem>>, vector<8x128xf32>,
    %c1_i32 = arith.constant 1 : i32
    %9 = arith.cmpi eq, %arg1, %c1_i32 : i32
    %10 = arith.extui %9 : i1 to i32
    %c0_i32_8 = arith.constant 0 : i32
    %11 = arith.cmpi ne, %10, %c0_i32_8 : i32
    scf.if %11 {
      %c0_9 = arith.constant 0 : index
      %c0_10 = arith.constant 0 : index
      %12 = vector.load %arg6[%c0_9, %c0_10] : memref<8x128xf32, #tpu.memory_space<vmem>>, vector<8x128xf32>
      %c0_11 = arith.constant 0 : index
      %c0_12 = arith.constant 0 : index
      %13 = vector.load %arg4[%c0_11, %c0_12] : memref<1x128xf32, #tpu.memory_space<vmem>>, vector<1x128xf32>
      %14 = vector.broadcast %13 : vector<1x128xf32> to vector<8x128xf32>
      %15 = arith.addf %12, %14 : vector<8x128xf32>
      %cst_13 = arith.constant 0.000000e+00 : f32
      %16 = vector.broadcast %cst_13 : f32 to vector<8x128xf32>
      %17 = arith.maximumf %15, %16 : vector<8x128xf32>
      %18 = arith.truncf %17 : vector<8x128xf32> to vector<8x128xbf16>
      %c0_14 = arith.constant 0 : index
      %c0_15 = arith.constant 0 : index
      %19 = vector.load %arg5[%c0_14, %c0_15] : memref<8x128xbf16, #tpu.memory_space<vmem>>, vector<8x128xbf16>
      tpu.vector_store %arg5[%c0_14, %c0_15], %18 {strides = array<i32>} : memref<8x128xbf16, #tpu.memory_space<vmem>>, vector<8x128xbf16>,
    } else {
    }
    return
  }
  func.func @transform_0(%arg0: i32, %arg1: i32) -> (i32, i32) {
    %c0_i32 = arith.constant 0 : i32
    %c0_i32_0 = arith.constant 0 : i32
    return %c0_i32, %arg1 : i32, i32
  }
  func.func @transform_1(%arg0: i32, %arg1: i32) -> (i32, i32) {
    %c0_i32 = arith.constant 0 : i32
    return %arg1, %arg0 : i32, i32
  }
  func.func @transform_2(%arg0: i32, %arg1: i32) -> (i32, i32) {
    %c0_i32 = arith.constant 0 : i32
    %c0_i32_0 = arith.constant 0 : i32
    return %c0_i32, %arg0 : i32, i32
  }
  func.func @transform_3(%arg0: i32, %arg1: i32) -> (i32, i32) {
    %c0_i32 = arith.constant 0 : i32
    %c0_i32_0 = arith.constant 0 : i32
    return %c0_i32, %arg0 : i32, i32
  }
}

module attributes {stable_mosaic.version = 11 : i64} {
  func.func @_heads_postprocess_kernel(%arg0: i32, %arg1: memref<8x32xbf16, #tpu.memory_space<vmem>>, %arg2: memref<32x128xbf16, #tpu.memory_space<vmem>>, %arg3: memref<1x128xf32, #tpu.memory_space<vmem>>, %arg4: memref<2x2xf32, #tpu.memory_space<smem>>, %arg5: memref<8x128xf32, #tpu.memory_space<vmem>>) attributes {dimension_semantics = [#tpu.dimension_semantics<parallel>], iteration_bounds = array<i64: 2>, scalar_prefetch = 0 : i64, scratch_operands = 0 : i64, tpu.core_type = #tpu.core_type<tc>, window_params = [{transform_indices = @transform_0, window_bounds = array<i64: 8, 32>}, {pipeline_mode = #tpu.pipeline_mode<synchronous>, transform_indices = @transform_1, window_bounds = array<i64: 32, 128>}, {pipeline_mode = #tpu.pipeline_mode<synchronous>, transform_indices = @transform_2, window_bounds = array<i64: 1, 128>}, {transform_indices = @transform_3, window_bounds = array<i64: 2, 2>}, {transform_indices = @transform_4, window_bounds = array<i64: 8, 128>}]} {
    %c0 = arith.constant 0 : index
    %c0_0 = arith.constant 0 : index
    %0 = vector.load %arg1[%c0, %c0_0] : memref<8x32xbf16, #tpu.memory_space<vmem>>, vector<8x32xbf16>
    %c0_1 = arith.constant 0 : index
    %c0_2 = arith.constant 0 : index
    %1 = vector.load %arg2[%c0_1, %c0_2] : memref<32x128xbf16, #tpu.memory_space<vmem>>, vector<32x128xbf16>
    %cst = arith.constant dense<0.000000e+00> : vector<8x128xf32>
    %2 = tpu.matmul %0, %1, %cst {dimension_numbers = #tpu.dot_dimension_numbers<[1], [0], [0], [1], [0, 0, 1, 1], [], []>} : vector<8x32xbf16>, vector<32x128xbf16>, vector<8x128xf32> -> vector<8x128xf32>
    %c0_3 = arith.constant 0 : index
    %c0_4 = arith.constant 0 : index
    %3 = vector.load %arg3[%c0_3, %c0_4] : memref<1x128xf32, #tpu.memory_space<vmem>>, vector<1x128xf32>
    %4 = vector.broadcast %3 : vector<1x128xf32> to vector<8x128xf32>
    %5 = arith.addf %2, %4 : vector<8x128xf32>
    %6 = arith.negf %5 : vector<8x128xf32>
    %7 = math.exp %6 : vector<8x128xf32>
    %cst_5 = arith.constant 1.000000e+00 : f32
    %8 = vector.broadcast %cst_5 : f32 to vector<8x128xf32>
    %9 = arith.addf %8, %7 : vector<8x128xf32>
    %10 = arith.divf %8, %9 : vector<8x128xf32>
    %11 = arith.index_cast %arg0 : i32 to index
    %c0_6 = arith.constant 0 : index
    %12 = memref.load %arg4[%11, %c0_6] : memref<2x2xf32, #tpu.memory_space<smem>>
    %13 = arith.index_cast %arg0 : i32 to index
    %c1 = arith.constant 1 : index
    %14 = memref.load %arg4[%13, %c1] : memref<2x2xf32, #tpu.memory_space<smem>>
    %15 = vector.extract_strided_slice %10 {offsets = [0, 0], sizes = [8, 1], strides = [1, 1]} : vector<8x128xf32> to vector<8x1xf32>
    %16 = vector.extract_strided_slice %10 {offsets = [0, 1], sizes = [8, 1], strides = [1, 1]} : vector<8x128xf32> to vector<8x1xf32>
    %17 = vector.extract_strided_slice %10 {offsets = [0, 2], sizes = [8, 1], strides = [1, 1]} : vector<8x128xf32> to vector<8x1xf32>
    %18 = vector.extract_strided_slice %10 {offsets = [0, 3], sizes = [8, 1], strides = [1, 1]} : vector<8x128xf32> to vector<8x1xf32>
    %cst_7 = arith.constant 5.000000e-01 : f32
    %19 = vector.broadcast %cst_7 : f32 to vector<8x1xf32>
    %20 = arith.mulf %19, %17 : vector<8x1xf32>
    %21 = arith.subf %15, %20 : vector<8x1xf32>
    %22 = vector.broadcast %12 : f32 to vector<8x1xf32>
    %23 = arith.mulf %21, %22 : vector<8x1xf32>
    %cst_8 = arith.constant 5.000000e-01 : f32
    %24 = vector.broadcast %cst_8 : f32 to vector<8x1xf32>
    %25 = arith.mulf %24, %18 : vector<8x1xf32>
    %26 = arith.subf %16, %25 : vector<8x1xf32>
    %27 = vector.broadcast %14 : f32 to vector<8x1xf32>
    %28 = arith.mulf %26, %27 : vector<8x1xf32>
    %cst_9 = arith.constant 5.000000e-01 : f32
    %29 = vector.broadcast %cst_9 : f32 to vector<8x1xf32>
    %30 = arith.mulf %29, %17 : vector<8x1xf32>
    %31 = arith.addf %15, %30 : vector<8x1xf32>
    %32 = vector.broadcast %12 : f32 to vector<8x1xf32>
    %33 = arith.mulf %31, %32 : vector<8x1xf32>
    %cst_10 = arith.constant 5.000000e-01 : f32
    %34 = vector.broadcast %cst_10 : f32 to vector<8x1xf32>
    %35 = arith.mulf %34, %18 : vector<8x1xf32>
    %36 = arith.addf %16, %35 : vector<8x1xf32>
    %37 = vector.broadcast %14 : f32 to vector<8x1xf32>
    %38 = arith.mulf %36, %37 : vector<8x1xf32>
    %39 = tpu.iota {dimensions = array<i32: 1>} : vector<8x128xi32>
    %c0_i32 = arith.constant 0 : i32
    %40 = vector.broadcast %c0_i32 : i32 to vector<8x128xi32>
    %41 = arith.cmpi eq, %39, %40 : vector<8x128xi32>
    %c1_i32 = arith.constant 1 : i32
    %42 = vector.broadcast %c1_i32 : i32 to vector<8x128xi32>
    %43 = arith.cmpi eq, %39, %42 : vector<8x128xi32>
    %c2_i32 = arith.constant 2 : i32
    %44 = vector.broadcast %c2_i32 : i32 to vector<8x128xi32>
    %45 = arith.cmpi eq, %39, %44 : vector<8x128xi32>
    %46 = vector.shape_cast %33 : vector<8x1xf32> to vector<8x1xf32>
    %47 = vector.broadcast %46 : vector<8x1xf32> to vector<8x128xf32>
    %48 = vector.shape_cast %38 : vector<8x1xf32> to vector<8x1xf32>
    %49 = vector.broadcast %48 : vector<8x1xf32> to vector<8x128xf32>
    %50 = arith.select %45, %47, %49 : vector<8x128xi1>, vector<8x128xf32>
    %51 = vector.shape_cast %28 : vector<8x1xf32> to vector<8x1xf32>
    %52 = vector.broadcast %51 : vector<8x1xf32> to vector<8x128xf32>
    %53 = arith.select %43, %52, %50 : vector<8x128xi1>, vector<8x128xf32>
    %54 = vector.shape_cast %23 : vector<8x1xf32> to vector<8x1xf32>
    %55 = vector.broadcast %54 : vector<8x1xf32> to vector<8x128xf32>
    %56 = arith.select %41, %55, %53 : vector<8x128xi1>, vector<8x128xf32>
    %c4_i32 = arith.constant 4 : i32
    %57 = vector.broadcast %c4_i32 : i32 to vector<8x128xi32>
    %58 = arith.cmpi slt, %39, %57 : vector<8x128xi32>
    %59 = arith.select %58, %56, %10 : vector<8x128xi1>, vector<8x128xf32>
    %c0_11 = arith.constant 0 : index
    %c0_12 = arith.constant 0 : index
    %60 = vector.load %arg5[%c0_11, %c0_12] : memref<8x128xf32, #tpu.memory_space<vmem>>, vector<8x128xf32>
    tpu.vector_store %arg5[%c0_11, %c0_12], %59 {strides = array<i32>} : memref<8x128xf32, #tpu.memory_space<vmem>>, vector<8x128xf32>,
    return
  }
  func.func @transform_0(%arg0: i32) -> (i32, i32) {
    %c0_i32 = arith.constant 0 : i32
    %c0_i32_0 = arith.constant 0 : i32
    return %arg0, %c0_i32 : i32, i32
  }
  func.func @transform_1(%arg0: i32) -> (i32, i32) {
    %c0_i32 = arith.constant 0 : i32
    %c0_i32_0 = arith.constant 0 : i32
    %c0_i32_1 = arith.constant 0 : i32
    return %c0_i32, %c0_i32_0 : i32, i32
  }
  func.func @transform_2(%arg0: i32) -> (i32, i32) {
    %c0_i32 = arith.constant 0 : i32
    %c0_i32_0 = arith.constant 0 : i32
    %c0_i32_1 = arith.constant 0 : i32
    return %c0_i32, %c0_i32_0 : i32, i32
  }
  func.func @transform_3(%arg0: i32) -> (i32, i32) {
    %c0_i32 = arith.constant 0 : i32
    %c0_i32_0 = arith.constant 0 : i32
    %c0_i32_1 = arith.constant 0 : i32
    return %c0_i32, %c0_i32_0 : i32, i32
  }
  func.func @transform_4(%arg0: i32) -> (i32, i32) {
    %c0_i32 = arith.constant 0 : i32
    %c0_i32_0 = arith.constant 0 : i32
    return %arg0, %c0_i32 : i32, i32
  }
}

</mosaic_0001>

<llo_original>
// kernel: rtdetr_forward.2
$region0: #{rtdetr_forward.2}
  #allocation0 [shape = 'u32[]', space=smem, size = 0x4, offset = 0x4, fixed_abs, tag = 'smem constant byte address 0x4 - core index']
  #allocation1 [shape = 'u32[144,128]{1,0:T(1,128)}', space=vmem, size = 0x12000, scoped, tag = 'internal scratch']
  #allocation2 [shape = 'f32[8,128]{1,0:T(8,128)}', space=vmem, size = 0x1000, scoped, tag = 'scratch operand']
  %s0 = inlined_call_operand.vmem [shape: bf16[8,1024], index: 0, kind: input, shape index: {}]
  %s1 = inlined_call_operand.vmem [shape: bf16[1024,256], index: 1, kind: input, shape index: {}]
  %s2 = inlined_call_operand.vmem [shape: f32[1,256], index: 2, kind: input, shape index: {}]
  %s3 = inlined_call_operand.vmem [shape: bf16[8,256], index: 3, kind: output, shape index: {}]
  %s4 = sld [smem:[#allocation0]]
  $region94: #{rtdetr_forward.2} parent=0
    _
  %s6 = ssub.s32 1, %s4
  %s7 = scalar_select 0, %s6, %s4
  $region1: #{rtdetr_forward.2} parent=0
    #allocation3 [shape = 'u8[262144]{0}', space=vmem, size = 0x40000, scoped, tag = 'input window, operand 1']
    loop: start=0, step=1, limit=6
    $region2: #{rtdetr_forward.2} parent=1 // loop_pre_header
      _
    $region3: #{rtdetr_forward.2} parent=1 // loop_header
      %s9 = sphi 0, %s13
      %p10 = scmp.ge.s32.totalorder %s9, 6
      %s16 = sphi 0, %s28
      %s17 = sphi 0, %s24
      %s18 = sphi 0, %s16
      %s19 = sphi 0, %s17
      %s20 = sphi 0, %s18
      %s21 = sphi 0, %s19
      %s31 = sphi 0, %s33
      %s34 = sphi 0, %s31
      %s35 = sphi 0, %s34
      %s51 = sphi 0, %s35
      %s59 = sphi 0, %s61
      %s62 = sphi 0, %s59
      %s63 = sphi 0, %s62
      %s79 = sphi 0, %s63
      %s85 = sphi 0, %s87
      %s88 = sphi 0, %s85
      %s89 = sphi 0, %s88
      %s105 = sphi 0, %s89
      %s111 = sphi 0, %s113
      %s114 = sphi 0, %s111
      %s115 = sphi 0, %s114
      %s131 = sphi 0, %s115
    $region4: #{rtdetr_forward.2} parent=1 // loop_header_branch
      %12 = sbr.rel (%p10) target = $region8
    $region5: #{rtdetr_forward.2} parent=1 // loop_body
      %s14 = ssub.s32 %s9, 1
      %s15 = ssub.s32 %s9, 2
      %s22 = sadd.s32 1, %s17
      %p23 = scmp.ge.s32.totalorder %s22, 2
      %s24 = scalar_select %p23, 0, %s22
      %s25 = sadd.s32 1, %s16
      %s26 = scalar_select %p23, %s25, %s16
      %p27 = scmp.ge.s32.totalorder %s26, 2
      %s28 = scalar_select %p27, 0, %s26
      %s29 = ssub.s32 %s17, %s24
      %p30 = scmp.eq.s32.totalorder %s29, 0
      %s32 = sadd.s32 %s31, 1
      %s33 = scalar_select %p30, %s31, %s32
      %p36 = pneg %p30
      %p37 = scmp.eq.s32.totalorder %s9, 3
      %p38 = por %p36, %p37
      %p39 = scmp.ne.s32.totalorder %s31, %s34
      %p40 = scmp.eq.s32.totalorder %s9, 0
      %p41 = por %p39, %p40
      %p42 = scmp.ne.s32.totalorder %s31, %s34
      %p43 = scmp.eq.s32.totalorder %s14, 3
      %p44 = por %p42, %p43
      %p45 = scmp.ne.s32.totalorder %s34, %s35
      %p46 = scmp.eq.s32.totalorder %s14, 0
      %p47 = por %p45, %p46
      %p48 = scmp.ne.s32.totalorder %s34, %s35
      %p49 = scmp.eq.s32.totalorder %s15, 3
      %p50 = por %p48, %p49
      %p52 = scmp.ne.s32.totalorder %s35, %s51
      %p53 = scmp.eq.s32.totalorder %s15, 0
      %p54 = por %p52, %p53
      %s55 = ssub.s32 %s17, %s24
      %s56 = ssub.s32 %s16, %s28
      %s57 = sor.u32 %s55, %s56
      %p58 = scmp.eq.s32.totalorder %s57, 0
      %s60 = sadd.s32 %s59, 1
      %s61 = scalar_select %p58, %s59, %s60
      %p64 = pneg %p58
      %p65 = scmp.eq.s32.totalorder %s9, 3
      %p66 = por %p64, %p65
      %p67 = scmp.ne.s32.totalorder %s59, %s62
      %p68 = scmp.eq.s32.totalorder %s9, 0
      %p69 = por %p67, %p68
      %p70 = scmp.ne.s32.totalorder %s59, %s62
      %p71 = scmp.eq.s32.totalorder %s14, 3
      %p72 = por %p70, %p71
      %p73 = scmp.ne.s32.totalorder %s62, %s63
      %p74 = scmp.eq.s32.totalorder %s14, 0
      %p75 = por %p73, %p74
      %p76 = scmp.ne.s32.totalorder %s62, %s63
      %p77 = scmp.eq.s32.totalorder %s15, 3
      %p78 = por %p76, %p77
      %p80 = scmp.ne.s32.totalorder %s63, %s79
      %p81 = scmp.eq.s32.totalorder %s15, 0
      %p82 = por %p80, %p81
      %s83 = ssub.s32 %s16, %s28
      %p84 = scmp.eq.s32.totalorder %s83, 0
      %s86 = sadd.s32 %s85, 1
      %s87 = scalar_select %p84, %s85, %s86
      %p90 = pneg %p84
      %p91 = scmp.eq.s32.totalorder %s9, 3
      %p92 = por %p90, %p91
      %p93 = scmp.ne.s32.totalorder %s85, %s88
      %p94 = scmp.eq.s32.totalorder %s9, 0
      %p95 = por %p93, %p94
      %p96 = scmp.ne.s32.totalorder %s85, %s88
      %p97 = scmp.eq.s32.totalorder %s14, 3
      %p98 = por %p96, %p97
      %p99 = scmp.ne.s32.totalorder %s88, %s89
      %p100 = scmp.eq.s32.totalorder %s14, 0
      %p101 = por %p99, %p100
      %p102 = scmp.ne.s32.totalorder %s88, %s89
      %p103 = scmp.eq.s32.totalorder %s15, 3
      %p104 = por %p102, %p103
      %p106 = scmp.ne.s32.totalorder %s89, %s105
      %p107 = scmp.eq.s32.totalorder %s15, 0
      %p108 = por %p106, %p107
      %s109 = ssub.s32 %s16, %s28
      %p110 = scmp.eq.s32.totalorder %s109, 0
      %s112 = sadd.s32 %s111, 1
      %s113 = scalar_select %p110, %s111, %s112
      %p116 = pneg %p110
      %p117 = scmp.eq.s32.totalorder %s9, 3
      %p118 = por %p116, %p117
      %p119 = scmp.ne.s32.totalorder %s111, %s114
      %p120 = scmp.eq.s32.totalorder %s9, 0
      %p121 = por %p119, %p120
      %p122 = scmp.ne.s32.totalorder %s111, %s114
      %p123 = scmp.eq.s32.totalorder %s14, 3
      %p124 = por %p122, %p123
      %p125 = scmp.ne.s32.totalorder %s114, %s115
      %p126 = scmp.eq.s32.totalorder %s14, 0
      %p127 = por %p125, %p126
      %p128 = scmp.ne.s32.totalorder %s114, %s115
      %p129 = scmp.eq.s32.totalorder %s15, 3
      %p130 = por %p128, %p129
      %p132 = scmp.ne.s32.totalorder %s115, %s131
      %p133 = scmp.eq.s32.totalorder %s15, 0
      %p134 = por %p132, %p133
      %p135 = scmp.le.s32.totalorder 1, %s9
      %p136 = scmp.lt.s32.totalorder %s9, 5
      %p137 = pnand %p135, %p136
      %p138 = pneg %p137
      // Predicated region
      $region9: #{rtdetr_forward.2} parent=5 // pred_check
        _
      $region10: #{rtdetr_forward.2} parent=5 // pred_check_branch
        %140 = sbr.rel (%p137) target = $region12
      $region11: #{rtdetr_forward.2} parent=5 // pred_region
        %s141 = ssub.s32 %s9, 1
      $region12: #{rtdetr_forward.2} parent=5 // pred_fallthru
        _
      %p142 = scmp.lt.s32.totalorder %s9, 4
      // Predicated region
      $region13: #{rtdetr_forward.2} parent=5 // pred_check
        %p143 = pneg %p142
      $region14: #{rtdetr_forward.2} parent=5 // pred_check_branch
        %145 = sbr.rel (%p143) target = $region16
      $region15: #{rtdetr_forward.2} parent=5 // pred_region
        // Predicated region
        $region17: #{rtdetr_forward.2} parent=15 // pred_check
          %p146 = pneg %p41
        $region18: #{rtdetr_forward.2} parent=15 // pred_check_branch
          %148 = sbr.rel (%p146) target = $region20
        $region19: #{rtdetr_forward.2} parent=15 // pred_region
          %s149 = smul.u32 4, %s17
          %p150 = scmp.lt.s32.totalorder %s149, 7
          %s151 = scalar_select %p150, %s149, 7
          %s152 = smul.addr %s151, 4
          %s153 = scalar_lea.vmem %s0, %s152
          %s154 = smul.u32 4, %s17
        $region20: #{rtdetr_forward.2} parent=15 // pred_fallthru
          _
        // Predicated region
        $region21: #{rtdetr_forward.2} parent=15 // pred_check
          %p155 = pneg %p69
        $region22: #{rtdetr_forward.2} parent=15 // pred_check_branch
          %157 = sbr.rel (%p155) target = $region24
        $region23: #{rtdetr_forward.2} parent=15 // pred_region
          %s158 = sand.u32 %s59, 1
          %s159 = sand.u32 %s59, 1
          %s160 = smul.addr %s159, 256
          %s161 = scalar_lea.vmem [#allocation3], %s160
          %s162 = smul.u32 64, %s17
          %s163 = smul.addr %s162, 2
          %s164 = sadd.s32 %s16, %s163
          %s165 = smul.addr %s164, 4
          %s166 = scalar_lea.vmem %s1, %s165
          // Predicated region
          $region25: #{rtdetr_forward.2} parent=23 // pred_check
            _
          $region26: #{rtdetr_forward.2} parent=23 // pred_check_branch
            %168 = sbr.rel (0) target = $region28
          $region27: #{rtdetr_forward.2} parent=23 // pred_region
            // Predicated region
            $region29: #{rtdetr_forward.2} parent=27 // pred_check
              _
            $region30: #{rtdetr_forward.2} parent=27 // pred_check_branch
              %170 = sbr.rel target = $region32
            $region31: #{rtdetr_forward.2} parent=27 // pred_region
              // Predicated region
              $region44: #{rtdetr_forward.2} parent=31 // pred_check
                _
              $region45: #{rtdetr_forward.2} parent=31 // pred_check_branch
                %311 = sbr.rel (0) target = $region47
              $region46: #{rtdetr_forward.2} parent=31 // pred_region
                loop: start=0, step=1, limit=1
                $region48: #{rtdetr_forward.2} parent=46 // loop_pre_header
                  _
                $region49: #{rtdetr_forward.2} parent=46 // loop_header
                  %s313 = sphi 0, %s317
                  %p314 = scmp.ge.s32.totalorder %s313, 1
                  %s318 = sphi %s166, %s166
                  %s319 = sphi %s161, %s161
                $region50: #{rtdetr_forward.2} parent=46 // loop_header_branch
                  %316 = sbr.rel (%p314) target = $region54
                $region51: #{rtdetr_forward.2} parent=46 // loop_body
                  _
                $region52: #{rtdetr_forward.2} parent=46 // loop_footer
                  %s317 = sadd.s32 1, %s313
                $region53: #{rtdetr_forward.2} parent=46 // loop_footer_branch
                  %312 = sbr.rel target = $region49
                $region54: #{rtdetr_forward.2} parent=46 // loop_exit
                  _
                loop: start=0, step=1, limit=1
                $region55: #{rtdetr_forward.2} parent=46 // loop_pre_header
                  _
                $region56: #{rtdetr_forward.2} parent=46 // loop_header
                  %s322 = sphi 0, %s326
                  %p323 = scmp.ge.s32.totalorder %s322, 1
                  %s327 = sphi %s166, %s166
                  %s328 = sphi %s161, %s161
                $region57: #{rtdetr_forward.2} parent=46 // loop_header_branch
                  %325 = sbr.rel (%p323) target = $region61
                $region58: #{rtdetr_forward.2} parent=46 // loop_body
                  %v329 = vld [vmem:[%s327] sm:$0xf]
                  %330 = vst [vmem:[%s328] sm:$0xf] %v329
                  %v331 = vld [vmem:[%s327 + $0x8] sm:$0xf]
                  %332 = vst [vmem:[%s328 + $0x4] sm:$0xf] %v331
                  %v333 = vld [vmem:[%s327 + $0x10] sm:$0xf]
                  %334 = vst [vmem:[%s328 + $0x8] sm:$0xf] %v333
                  %v335 = vld [vmem:[%s327 + $0x18] sm:$0xf]
                  %336 = vst [vmem:[%s328 + $0xc] sm:$0xf] %v335
                  %v337 = vld [vmem:[%s327 + $0x20] sm:$0xf]
                  %338 = vst [vmem:[%s328 + $0x10] sm:$0xf] %v337
                  %v339 = vld [vmem:[%s327 + $0x28] sm:$0xf]
                  %340 = vst [vmem:[%s328 + $0x14] sm:$0xf] %v339
                  %v341 = vld [vmem:[%s327 + $0x30] sm:$0xf]
                  %342 = vst [vmem:[%s328 + $0x18] sm:$0xf] %v341
                  %v343 = vld [vmem:[%s327 + $0x38] sm:$0xf]
                  %344 = vst [vmem:[%s328 + $0x1c] sm:$0xf] %v343
                  %v345 = vld [vmem:[%s327 + $0x40] sm:$0xf]
                  %346 = vst [vmem:[%s328 + $0x20] sm:$0xf] %v345
                  %v347 = vld [vmem:[%s327 + $0x48] sm:$0xf]
                  %348 = vst [vmem:[%s328 + $0x24] sm:$0xf] %v347
                  %v349 = vld [vmem:[%s327 + $0x50] sm:$0xf]
                  %350 = vst [vmem:[%s328 + $0x28] sm:$0xf] %v349
                  %v351 = vld [vmem:[%s327 + $0x58] sm:$0xf]
                  %352 = vst [vmem:[%s328 + $0x2c] sm:$0xf] %v351
                  %v353 = vld [vmem:[%s327 + $0x60] sm:$0xf]
                  %354 = vst [vmem:[%s328 + $0x30] sm:$0xf] %v353
                  %v355 = vld [vmem:[%s327 + $0x68] sm:$0xf]
                  %356 = vst [vmem:[%s328 + $0x34] sm:$0xf] %v355
                  %v357 = vld [vmem:[%s327 + $0x70] sm:$0xf]
                  %358 = vst [vmem:[%s328 + $0x38] sm:$0xf] %v357
                  %v359 = vld [vmem:[%s327 + $0x78] sm:$0xf]
                  %360 = vst [vmem:[%s328 + $0x3c] sm:$0xf] %v359
                  %v361 = vld [vmem:[%s327 + $0x80] sm:$0xf]
                  %362 = vst [vmem:[%s328 + $0x40] sm:$0xf] %v361
                  %v363 = vld [vmem:[%s327 + $0x88] sm:$0xf]
                  %364 = vst [vmem:[%s328 + $0x44] sm:$0xf] %v363
                  %v365 = vld [vmem:[%s327 + $0x90] sm:$0xf]
                  %366 = vst [vmem:[%s328 + $0x48] sm:$0xf] %v365
                  %v367 = vld [vmem:[%s327 + $0x98] sm:$0xf]
                  %368 = vst [vmem:[%s328 + $0x4c] sm:$0xf] %v367
                  %v369 = vld [vmem:[%s327 + $0xa0] sm:$0xf]
                  %370 = vst [vmem:[%s328 + $0x50] sm:$0xf] %v369
                  %v371 = vld [vmem:[%s327 + $0xa8] sm:$0xf]
                  %372 = vst [vmem:[%s328 + $0x54] sm:$0xf] %v371
                  %v373 = vld [vmem:[%s327 + $0xb0] sm:$0xf]
                  %374 = vst [vmem:[%s328 + $0x58] sm:$0xf] %v373
                  %v375 = vld [vmem:[%s327 + $0xb8] sm:$0xf]
                  %376 = vst [vmem:[%s328 + $0x5c] sm:$0xf] %v375
                  %v377 = vld [vmem:[%s327 + $0xc0] sm:$0xf]
                  %378 = vst [vmem:[%s328 + $0x60] sm:$0xf] %v377
                  %v379 = vld [vmem:[%s327 + $0xc8] sm:$0xf]
                  %380 = vst [vmem:[%s328 + $0x64] sm:$0xf] %v379
                  %v381 = vld [vmem:[%s327 + $0xd0] sm:$0xf]
                  %382 = vst [vmem:[%s328 + $0x68] sm:$0xf] %v381
                  %v383 = vld [vmem:[%s327 + $0xd8] sm:$0xf]
                  %384 = vst [vmem:[%s328 + $0x6c] sm:$0xf] %v383
                  %v385 = vld [vmem:[%s327 + $0xe0] sm:$0xf]
                  %386 = vst [vmem:[%s328 + $0x70] sm:$0xf] %v385
                  %v387 = vld [vmem:[%s327 + $0xe8] sm:$0xf]
                  %388 = vst [vmem:[%s328 + $0x74] sm:$0xf] %v387
                  %v389 = vld [vmem:[%s327 + $0xf0] sm:$0xf]
                  %390 = vst [vmem:[%s328 + $0x78] sm:$0xf] %v389
                  %v391 = vld [vmem:[%s327 + $0xf8] sm:$0xf]
                  %392 = vst [vmem:[%s328 + $0x7c] sm:$0xf] %v391
                  %v393 = vld [vmem:[%s327 + $0x100] sm:$0xf]
                  %394 = vst [vmem:[%s328 + $0x80] sm:$0xf] %v393
                  %v395 = vld [vmem:[%s327 + $0x108] sm:$0xf]
                  %396 = vst [vmem:[%s328 + $0x84] sm:$0xf] %v395
                  %v397 = vld [vmem:[%s327 + $0x110] sm:$0xf]
                  %398 = vst [vmem:[%s328 + $0x88] sm:$0xf] %v397
                  %v399 = vld [vmem:[%s327 + $0x118] sm:$0xf]
                  %400 = vst [vmem:[%s328 + $0x8c] sm:$0xf] %v399
                  %v401 = vld [vmem:[%s327 + $0x120] sm:$0xf]
                  %402 = vst [vmem:[%s328 + $0x90] sm:$0xf] %v401
                  %v403 = vld [vmem:[%s327 + $0x128] sm:$0xf]
                  %404 = vst [vmem:[%s328 + $0x94] sm:$0xf] %v403
                  %v405 = vld [vmem:[%s327 + $0x130] sm:$0xf]
                  %406 = vst [vmem:[%s328 + $0x98] sm:$0xf] %v405
                  %v407 = vld [vmem:[%s327 + $0x138] sm:$0xf]
                  %408 = vst [vmem:[%s328 + $0x9c] sm:$0xf] %v407
                  %v409 = vld [vmem:[%s327 + $0x140] sm:$0xf]
                  %410 = vst [vmem:[%s328 + $0xa0] sm:$0xf] %v409
                  %v411 = vld [vmem:[%s327 + $0x148] sm:$0xf]
                  %412 = vst [vmem:[%s328 + $0xa4] sm:$0xf] %v411
                  %v413 = vld [vmem:[%s327 + $0x150] sm:$0xf]
                  %414 = vst [vmem:[%s328 + $0xa8] sm:$0xf] %v413
                  %v415 = vld [vmem:[%s327 + $0x158] sm:$0xf]
                  %416 = vst [vmem:[%s328 + $0xac] sm:$0xf] %v415
                  %v417 = vld [vmem:[%s327 + $0x160] sm:$0xf]
                  %418 = vst [vmem:[%s328 + $0xb0] sm:$0xf] %v417
                  %v419 = vld [vmem:[%s327 + $0x168] sm:$0xf]
                  %420 = vst [vmem:[%s328 + $0xb4] sm:$0xf] %v419
                  %v421 = vld [vmem:[%s327 + $0x170] sm:$0xf]
                  %422 = vst [vmem:[%s328 + $0xb8] sm:$0xf] %v421
                  %v423 = vld [vmem:[%s327 + $0x178] sm:$0xf]
                  %424 = vst [vmem:[%s328 + $0xbc] sm:$0xf] %v423
                  %v425 = vld [vmem:[%s327 + $0x180] sm:$0xf]
                  %426 = vst [vmem:[%s328 + $0xc0] sm:$0xf] %v425
                  %v427 = vld [vmem:[%s327 + $0x188] sm:$0xf]
                  %428 = vst [vmem:[%s328 + $0xc4] sm:$0xf] %v427
                  %v429 = vld [vmem:[%s327 + $0x190] sm:$0xf]
                  %430 = vst [vmem:[%s328 + $0xc8] sm:$0xf] %v429
                  %v431 = vld [vmem:[%s327 + $0x198] sm:$0xf]
                  %432 = vst [vmem:[%s328 + $0xcc] sm:$0xf] %v431
                  %v433 = vld [vmem:[%s327 + $0x1a0] sm:$0xf]
                  %434 = vst [vmem:[%s328 + $0xd0] sm:$0xf] %v433
                  %v435 = vld [vmem:[%s327 + $0x1a8] sm:$0xf]
                  %436 = vst [vmem:[%s328 + $0xd4] sm:$0xf] %v435
                  %v437 = vld [vmem:[%s327 + $0x1b0] sm:$0xf]
                  %438 = vst [vmem:[%s328 + $0xd8] sm:$0xf] %v437
                  %v439 = vld [vmem:[%s327 + $0x1b8] sm:$0xf]
                  %440 = vst [vmem:[%s328 + $0xdc] sm:$0xf] %v439
                  %v441 = vld [vmem:[%s327 + $0x1c0] sm:$0xf]
                  %442 = vst [vmem:[%s328 + $0xe0] sm:$0xf] %v441
                  %v443 = vld [vmem:[%s327 + $0x1c8] sm:$0xf]
                  %444 = vst [vmem:[%s328 + $0xe4] sm:$0xf] %v443
                  %v445 = vld [vmem:[%s327 + $0x1d0] sm:$0xf]
                  %446 = vst [vmem:[%s328 + $0xe8] sm:$0xf] %v445
                  %v447 = vld [vmem:[%s327 + $0x1d8] sm:$0xf]
                  %448 = vst [vmem:[%s328 + $0xec] sm:$0xf] %v447
                  %v449 = vld [vmem:[%s327 + $0x1e0] sm:$0xf]
                  %450 = vst [vmem:[%s328 + $0xf0] sm:$0xf] %v449
                  %v451 = vld [vmem:[%s327 + $0x1e8] sm:$0xf]
                  %452 = vst [vmem:[%s328 + $0xf4] sm:$0xf] %v451
                  %v453 = vld [vmem:[%s327 + $0x1f0] sm:$0xf]
                  %454 = vst [vmem:[%s328 + $0xf8] sm:$0xf] %v453
                  %v455 = vld [vmem:[%s327 + $0x1f8] sm:$0xf]
                  %456 = vst [vmem:[%s328 + $0xfc] sm:$0xf] %v455
                $region59: #{rtdetr_forward.2} parent=46 // loop_footer
                  %s326 = sadd.s32 1, %s322
                $region60: #{rtdetr_forward.2} parent=46 // loop_footer_branch
                  %321 = sbr.rel target = $region56
                $region61: #{rtdetr_forward.2} parent=46 // loop_exit
                  _
              $region47: #{rtdetr_forward.2} parent=31 // pred_fallthru
                _
            $region32: #{rtdetr_forward.2} parent=27 // pred_fallthru
              _
            // Predicated region
            $region33: #{rtdetr_forward.2} parent=27 // pred_check
              _
            $region34: #{rtdetr_forward.2} parent=27 // pred_check_branch
              %172 = sbr.rel (0) target = $region36
            $region35: #{rtdetr_forward.2} parent=27 // pred_region
              loop: start=0, step=1, limit=1
              $region37: #{rtdetr_forward.2} parent=35 // loop_pre_header
                _
              $region38: #{rtdetr_forward.2} parent=35 // loop_header
                %s175 = sphi 0, %s179
                %p176 = scmp.ge.s32.totalorder %s175, 1
                %s180 = sphi %s166, %s166
                %s181 = sphi %s161, %s161
              $region39: #{rtdetr_forward.2} parent=35 // loop_header_branch
                %178 = sbr.rel (%p176) target = $region43
              $region40: #{rtdetr_forward.2} parent=35 // loop_body
                %v182 = vld [vmem:[%s180] sm:$0xf]
                %183 = vst [vmem:[%s181] sm:$0xf] %v182
                %v184 = vld [vmem:[%s180 + $0x8] sm:$0xf]
                %185 = vst [vmem:[%s181 + $0x4] sm:$0xf] %v184
                %v186 = vld [vmem:[%s180 + $0x10] sm:$0xf]
                %187 = vst [vmem:[%s181 + $0x8] sm:$0xf] %v186
                %v188 = vld [vmem:[%s180 + $0x18] sm:$0xf]
                %189 = vst [vmem:[%s181 + $0xc] sm:$0xf] %v188
                %v190 = vld [vmem:[%s180 + $0x20] sm:$0xf]
                %191 = vst [vmem:[%s181 + $0x10] sm:$0xf] %v190
                %v192 = vld [vmem:[%s180 + $0x28] sm:$0xf]
                %193 = vst [vmem:[%s181 + $0x14] sm:$0xf] %v192
                %v194 = vld [vmem:[%s180 + $0x30] sm:$0xf]
                %195 = vst [vmem:[%s181 + $0x18] sm:$0xf] %v194
                %v196 = vld [vmem:[%s180 + $0x38] sm:$0xf]
                %197 = vst [vmem:[%s181 + $0x1c] sm:$0xf] %v196
                %v198 = vld [vmem:[%s180 + $0x40] sm:$0xf]
                %199 = vst [vmem:[%s181 + $0x20] sm:$0xf] %v198
                %v200 = vld [vmem:[%s180 + $0x48] sm:$0xf]
                %201 = vst [vmem:[%s181 + $0x24] sm:$0xf] %v200
                %v202 = vld [vmem:[%s180 + $0x50] sm:$0xf]
                %203 = vst [vmem:[%s181 + $0x28] sm:$0xf] %v202
                %v204 = vld [vmem:[%s180 + $0x58] sm:$0xf]
                %205 = vst [vmem:[%s181 + $0x2c] sm:$0xf] %v204
                %v206 = vld [vmem:[%s180 + $0x60] sm:$0xf]
                %207 = vst [vmem:[%s181 + $0x30] sm:$0xf] %v206
                %v208 = vld [vmem:[%s180 + $0x68] sm:$0xf]
                %209 = vst [vmem:[%s181 + $0x34] sm:$0xf] %v208
                %v210 = vld [vmem:[%s180 + $0x70] sm:$0xf]
                %211 = vst [vmem:[%s181 + $0x38] sm:$0xf] %v210
                %v212 = vld [vmem:[%s180 + $0x78] sm:$0xf]
                %213 = vst [vmem:[%s181 + $0x3c] sm:$0xf] %v212
                %v214 = vld [vmem:[%s180 + $0x80] sm:$0xf]
                %215 = vst [vmem:[%s181 + $0x40] sm:$0xf] %v214
                %v216 = vld [vmem:[%s180 + $0x88] sm:$0xf]
                %217 = vst [vmem:[%s181 + $0x44] sm:$0xf] %v216
                %v218 = vld [vmem:[%s180 + $0x90] sm:$0xf]
                %219 = vst [vmem:[%s181 + $0x48] sm:$0xf] %v218
                %v220 = vld [vmem:[%s180 + $0x98] sm:$0xf]
                %221 = vst [vmem:[%s181 + $0x4c] sm:$0xf] %v220
                %v222 = vld [vmem:[%s180 + $0xa0] sm:$0xf]
                %223 = vst [vmem:[%s181 + $0x50] sm:$0xf] %v222
                %v224 = vld [vmem:[%s180 + $0xa8] sm:$0xf]
                %225 = vst [vmem:[%s181 + $0x54] sm:$0xf] %v224
                %v226 = vld [vmem:[%s180 + $0xb0] sm:$0xf]
                %227 = vst [vmem:[%s181 + $0x58] sm:$0xf] %v226
                %v228 = vld [vmem:[%s180 + $0xb8] sm:$0xf]
                %229 = vst [vmem:[%s181 + $0x5c] sm:$0xf] %v228
                %v230 = vld [vmem:[%s180 + $0xc0] sm:$0xf]
                %231 = vst [vmem:[%s181 + $0x60] sm:$0xf] %v230
                %v232 = vld [vmem:[%s180 + $0xc8] sm:$0xf]
                %233 = vst [vmem:[%s181 + $0x64] sm:$0xf] %v232
                %v234 = vld [vmem:[%s180 + $0xd0] sm:$0xf]
                %235 = vst [vmem:[%s181 + $0x68] sm:$0xf] %v234
                %v236 = vld [vmem:[%s180 + $0xd8] sm:$0xf]
                %237 = vst [vmem:[%s181 + $0x6c] sm:$0xf] %v236
                %v238 = vld [vmem:[%s180 + $0xe0] sm:$0xf]
                %239 = vst [vmem:[%s181 + $0x70] sm:$0xf] %v238
                %v240 = vld [vmem:[%s180 + $0xe8] sm:$0xf]
                %241 = vst [vmem:[%s181 + $0x74] sm:$0xf] %v240
                %v242 = vld [vmem:[%s180 + $0xf0] sm:$0xf]
                %243 = vst [vmem:[%s181 + $0x78] sm:$0xf] %v242
                %v244 = vld [vmem:[%s180 + $0xf8] sm:$0xf]
                %245 = vst [vmem:[%s181 + $0x7c] sm:$0xf] %v244
                %v246 = vld [vmem:[%s180 + $0x100] sm:$0xf]
                %247 = vst [vmem:[%s181 + $0x80] sm:$0xf] %v246
                %v248 = vld [vmem:[%s180 + $0x108] sm:$0xf]
                %249 = vst [vmem:[%s181 + $0x84] sm:$0xf] %v248
                %v250 = vld [vmem:[%s180 + $0x110] sm:$0xf]
                %251 = vst [vmem:[%s181 + $0x88] sm:$0xf] %v250
                %v252 = vld [vmem:[%s180 + $0x118] sm:$0xf]
                %253 = vst [vmem:[%s181 + $0x8c] sm:$0xf] %v252
                %v254 = vld [vmem:[%s180 + $0x120] sm:$0xf]
                %255 = vst [vmem:[%s181 + $0x90] sm:$0xf] %v254
                %v256 = vld [vmem:[%s180 + $0x128] sm:$0xf]
                %257 = vst [vmem:[%s181 + $0x94] sm:$0xf] %v256
                %v258 = vld [vmem:[%s180 + $0x130] sm:$0xf]
                %259 = vst [vmem:[%s181 + $0x98] sm:$0xf] %v258
                %v260 = vld [vmem:[%s180 + $0x138] sm:$0xf]
                %261 = vst [vmem:[%s181 + $0x9c] sm:$0xf] %v260
                %v262 = vld [vmem:[%s180 + $0x140] sm:$0xf]
                %263 = vst [vmem:[%s181 + $0xa0] sm:$0xf] %v262
                %v264 = vld [vmem:[%s180 + $0x148] sm:$0xf]
                %265 = vst [vmem:[%s181 + $0xa4] sm:$0xf] %v264
                %v266 = vld [vmem:[%s180 + $0x150] sm:$0xf]
                %267 = vst [vmem:[%s181 + $0xa8] sm:$0xf] %v266
                %v268 = vld [vmem:[%s180 + $0x158] sm:$0xf]
                %269 = vst [vmem:[%s181 + $0xac] sm:$0xf] %v268
                %v270 = vld [vmem:[%s180 + $0x160] sm:$0xf]
                %271 = vst [vmem:[%s181 + $0xb0] sm:$0xf] %v270
                %v272 = vld [vmem:[%s180 + $0x168] sm:$0xf]
                %273 = vst [vmem:[%s181 + $0xb4] sm:$0xf] %v272
                %v274 = vld [vmem:[%s180 + $0x170] sm:$0xf]
                %275 = vst [vmem:[%s181 + $0xb8] sm:$0xf] %v274
                %v276 = vld [vmem:[%s180 + $0x178] sm:$0xf]
                %277 = vst [vmem:[%s181 + $0xbc] sm:$0xf] %v276
                %v278 = vld [vmem:[%s180 + $0x180] sm:$0xf]
                %279 = vst [vmem:[%s181 + $0xc0] sm:$0xf] %v278
                %v280 = vld [vmem:[%s180 + $0x188] sm:$0xf]
                %281 = vst [vmem:[%s181 + $0xc4] sm:$0xf] %v280
                %v282 = vld [vmem:[%s180 + $0x190] sm:$0xf]
                %283 = vst [vmem:[%s181 + $0xc8] sm:$0xf] %v282
                %v284 = vld [vmem:[%s180 + $0x198] sm:$0xf]
                %285 = vst [vmem:[%s181 + $0xcc] sm:$0xf] %v284
                %v286 = vld [vmem:[%s180 + $0x1a0] sm:$0xf]
                %287 = vst [vmem:[%s181 + $0xd0] sm:$0xf] %v286
                %v288 = vld [vmem:[%s180 + $0x1a8] sm:$0xf]
                %289 = vst [vmem:[%s181 + $0xd4] sm:$0xf] %v288
                %v290 = vld [vmem:[%s180 + $0x1b0] sm:$0xf]
                %291 = vst [vmem:[%s181 + $0xd8] sm:$0xf] %v290
                %v292 = vld [vmem:[%s180 + $0x1b8] sm:$0xf]
                %293 = vst [vmem:[%s181 + $0xdc] sm:$0xf] %v292
                %v294 = vld [vmem:[%s180 + $0x1c0] sm:$0xf]
                %295 = vst [vmem:[%s181 + $0xe0] sm:$0xf] %v294
                %v296 = vld [vmem:[%s180 + $0x1c8] sm:$0xf]
                %297 = vst [vmem:[%s181 + $0xe4] sm:$0xf] %v296
                %v298 = vld [vmem:[%s180 + $0x1d0] sm:$0xf]
                %299 = vst [vmem:[%s181 + $0xe8] sm:$0xf] %v298
                %v300 = vld [vmem:[%s180 + $0x1d8] sm:$0xf]
                %301 = vst [vmem:[%s181 + $0xec] sm:$0xf] %v300
                %v302 = vld [vmem:[%s180 + $0x1e0] sm:$0xf]
                %303 = vst [vmem:[%s181 + $0xf0] sm:$0xf] %v302
                %v304 = vld [vmem:[%s180 + $0x1e8] sm:$0xf]
                %305 = vst [vmem:[%s181 + $0xf4] sm:$0xf] %v304
                %v306 = vld [vmem:[%s180 + $0x1f0] sm:$0xf]
                %307 = vst [vmem:[%s181 + $0xf8] sm:$0xf] %v306
                %v308 = vld [vmem:[%s180 + $0x1f8] sm:$0xf]
                %309 = vst [vmem:[%s181 + $0xfc] sm:$0xf] %v308
              $region41: #{rtdetr_forward.2} parent=35 // loop_footer
                %s179 = sadd.s32 1, %s175
              $region42: #{rtdetr_forward.2} parent=35 // loop_footer_branch
                %174 = sbr.rel target = $region38
              $region43: #{rtdetr_forward.2} parent=35 // loop_exit
                _
            $region36: #{rtdetr_forward.2} parent=27 // pred_fallthru
              _
          $region28: #{rtdetr_forward.2} parent=23 // pred_fallthru
            _
          %457 = vnop
        $region24: #{rtdetr_forward.2} parent=15 // pred_fallthru
          _
        // Predicated region
        $region62: #{rtdetr_forward.2} parent=15 // pred_check
          %p458 = pneg %p95
        $region63: #{rtdetr_forward.2} parent=15 // pred_check_branch
          %460 = sbr.rel (%p458) target = $region65
        $region64: #{rtdetr_forward.2} parent=15 // pred_region
          %p461 = scmp.lt.s32.totalorder %s16, 1
          %s462 = scalar_select %p461, %s16, 1
          %s463 = scalar_lea.vmem %s2, %s462
        $region65: #{rtdetr_forward.2} parent=15 // pred_fallthru
          _
      $region16: #{rtdetr_forward.2} parent=5 // pred_fallthru
        _
      %p464 = scmp.le.s32.totalorder 1, %s9
      %p465 = scmp.lt.s32.totalorder %s9, 5
      %p466 = pnand %p464, %p465
      %p467 = pneg %p466
      // Predicated region
      $region66: #{rtdetr_forward.2} parent=5 // pred_check
        _
      $region67: #{rtdetr_forward.2} parent=5 // pred_check_branch
        %469 = sbr.rel (%p466) target = $region69
      $region68: #{rtdetr_forward.2} parent=5 // pred_region
        %s470 = ssub.s32 %s9, 1
        %s471 = sand.u32 %s62, 1
        %s472 = sand.u32 %s62, 1
        %s473 = smul.addr %s472, 256
        %s474 = scalar_lea.vmem [#allocation3], %s473
        // Predicated region
        $region70: #{rtdetr_forward.2} parent=68 // pred_check
          %p475 = pneg %p75
        $region71: #{rtdetr_forward.2} parent=68 // pred_check_branch
          %477 = sbr.rel (%p475) target = $region73
        $region72: #{rtdetr_forward.2} parent=68 // pred_region
          _
        $region73: #{rtdetr_forward.2} parent=68 // pred_fallthru
          _
        %s478 = smul.u32 4, %s19
        %p479 = scmp.lt.s32.totalorder %s478, 7
        %s480 = scalar_select %p479, %s478, 7
        %s481 = smul.addr %s480, 4
        %s482 = scalar_lea.vmem %s0, %s481
        %p483 = pneg %p47
        %p484 = pneg %p44
        %s485 = sand.u32 %s62, 1
        %s486 = sand.u32 %s62, 1
        %s487 = smul.addr %s486, 256
        %s488 = scalar_lea.vmem [#allocation3], %s487
        %p489 = pneg %p75
        %p490 = pneg %p72
        %p491 = scmp.lt.s32.totalorder %s18, 1
        %s492 = scalar_select %p491, %s18, 1
        %s493 = scalar_lea.vmem %s2, %s492
        %p494 = pneg %p101
        %p495 = pneg %p98
        %p496 = pneg %p127
        %p497 = pneg %p124
        %p498 = scmp.lt.s32.totalorder %s18, 1
        %s499 = scalar_select %p498, %s18, 1
        %s500 = smul.addr %s499, 4
        %s501 = scalar_lea.vmem %s3, %s500
        %s502 = smul.u32 4, %s19
        %p503 = scmp.lt.s32.totalorder %s502, 7
        %s504 = scalar_select %p503, %s502, 7
        %s505 = smul.addr %s504, 4
        %s506 = scalar_lea.vmem %s0, %s505
        %s507 = smul.u32 4, %s19
        %s508 = smul.u32 64, %s19
        %p509 = scmp.lt.s32.totalorder %s18, 1
        %s510 = scalar_select %p509, %s18, 1
        %s511 = scalar_lea.vmem %s2, %s510
        %p512 = scmp.lt.s32.totalorder %s18, 1
        %s513 = scalar_select %p512, %s18, 1
        %s514 = smul.addr %s513, 4
        %s515 = scalar_lea.vmem %s3, %s514
        %p517 = scmp.eq.s32.totalorder %s19, 0
        // Predicated region
        $region74: #{rtdetr_forward.2} parent=68 // pred_check
          %p518 = pneg %p517
        $region75: #{rtdetr_forward.2} parent=68 // pred_check_branch
          %520 = sbr.rel (%p518) target = $region77
        $region76: #{rtdetr_forward.2} parent=68 // pred_region
          %521 = vst [vmem:[#allocation2] sm:$0xff] 0.0
        $region77: #{rtdetr_forward.2} parent=68 // pred_fallthru
          _
        %v522 = vld [vmem:[#allocation2] sm:$0xff]
        %v523 = vld [vmem:[%s506] sm:$0xff]
        %v524 = vld [vmem:[%s506 + $0x8] sm:$0xff]
        %v525 = vld [vmem:[%s474] sm:$0xf]
        %v526 = vld [vmem:[%s474 + $0x4] sm:$0xf]
        %v527 = vld [vmem:[%s474 + $0x8] sm:$0xf]
        %v528 = vld [vmem:[%s474 + $0xc] sm:$0xf]
        %v529 = vld [vmem:[%s474 + $0x10] sm:$0xf]
        %v530 = vld [vmem:[%s474 + $0x14] sm:$0xf]
        %v531 = vld [vmem:[%s474 + $0x18] sm:$0xf]
        %v532 = vld [vmem:[%s474 + $0x1c] sm:$0xf]
        %v533 = vld [vmem:[%s474 + $0x20] sm:$0xf]
        %v534 = vld [vmem:[%s474 + $0x24] sm:$0xf]
        %v535 = vld [vmem:[%s474 + $0x28] sm:$0xf]
        %v536 = vld [vmem:[%s474 + $0x2c] sm:$0xf]
        %v537 = vld [vmem:[%s474 + $0x30] sm:$0xf]
        %v538 = vld [vmem:[%s474 + $0x34] sm:$0xf]
        %v539 = vld [vmem:[%s474 + $0x38] sm:$0xf]
        %v540 = vld [vmem:[%s474 + $0x3c] sm:$0xf]
        %v541 = vld [vmem:[%s474 + $0x40] sm:$0xf]
        %v542 = vld [vmem:[%s474 + $0x44] sm:$0xf]
        %v543 = vld [vmem:[%s474 + $0x48] sm:$0xf]
        %v544 = vld [vmem:[%s474 + $0x4c] sm:$0xf]
        %v545 = vld [vmem:[%s474 + $0x50] sm:$0xf]
        %v546 = vld [vmem:[%s474 + $0x54] sm:$0xf]
        %v547 = vld [vmem:[%s474 + $0x58] sm:$0xf]
        %v548 = vld [vmem:[%s474 + $0x5c] sm:$0xf]
        %v549 = vld [vmem:[%s474 + $0x60] sm:$0xf]
        %v550 = vld [vmem:[%s474 + $0x64] sm:$0xf]
        %v551 = vld [vmem:[%s474 + $0x68] sm:$0xf]
        %v552 = vld [vmem:[%s474 + $0x6c] sm:$0xf]
        %v553 = vld [vmem:[%s474 + $0x70] sm:$0xf]
        %v554 = vld [vmem:[%s474 + $0x74] sm:$0xf]
        %v555 = vld [vmem:[%s474 + $0x78] sm:$0xf]
        %v556 = vld [vmem:[%s474 + $0x7c] sm:$0xf]
        %v557 = vld [vmem:[%s474 + $0x80] sm:$0xf]
        %v558 = vld [vmem:[%s474 + $0x84] sm:$0xf]
        %v559 = vld [vmem:[%s474 + $0x88] sm:$0xf]
        %v560 = vld [vmem:[%s474 + $0x8c] sm:$0xf]
        %v561 = vld [vmem:[%s474 + $0x90] sm:$0xf]
        %v562 = vld [vmem:[%s474 + $0x94] sm:$0xf]
        %v563 = vld [vmem:[%s474 + $0x98] sm:$0xf]
        %v564 = vld [vmem:[%s474 + $0x9c] sm:$0xf]
        %v565 = vld [vmem:[%s474 + $0xa0] sm:$0xf]
        %v566 = vld [vmem:[%s474 + $0xa4] sm:$0xf]
        %v567 = vld [vmem:[%s474 + $0xa8] sm:$0xf]
        %v568 = vld [vmem:[%s474 + $0xac] sm:$0xf]
        %v569 = vld [vmem:[%s474 + $0xb0] sm:$0xf]
        %v570 = vld [vmem:[%s474 + $0xb4] sm:$0xf]
        %v571 = vld [vmem:[%s474 + $0xb8] sm:$0xf]
        %v572 = vld [vmem:[%s474 + $0xbc] sm:$0xf]
        %v573 = vld [vmem:[%s474 + $0xc0] sm:$0xf]
        %v574 = vld [vmem:[%s474 + $0xc4] sm:$0xf]
        %v575 = vld [vmem:[%s474 + $0xc8] sm:$0xf]
        %v576 = vld [vmem:[%s474 + $0xcc] sm:$0xf]
        %v577 = vld [vmem:[%s474 + $0xd0] sm:$0xf]
        %v578 = vld [vmem:[%s474 + $0xd4] sm:$0xf]
        %v579 = vld [vmem:[%s474 + $0xd8] sm:$0xf]
        %v580 = vld [vmem:[%s474 + $0xdc] sm:$0xf]
        %v581 = vld [vmem:[%s474 + $0xe0] sm:$0xf]
        %v582 = vld [vmem:[%s474 + $0xe4] sm:$0xf]
        %v583 = vld [vmem:[%s474 + $0xe8] sm:$0xf]
        %v584 = vld [vmem:[%s474 + $0xec] sm:$0xf]
        %v585 = vld [vmem:[%s474 + $0xf0] sm:$0xf]
        %v586 = vld [vmem:[%s474 + $0xf4] sm:$0xf]
        %v587 = vld [vmem:[%s474 + $0xf8] sm:$0xf]
        %v588 = vld [vmem:[%s474 + $0xfc] sm:$0xf]
        %v591 = vunpack.c.l.b16 %v523
        %v592 = vunpack.c.h.b16 %v523
        %v593 = vunpack.c.l.b16 %v524
        %v594 = vunpack.c.h.b16 %v524
        %v595 = vpack.c.b16 %v591, %v591
        %v596 = vpack.c.b16 %v592, %v592
        %v597 = vpack.c.b16 %v593, %v593
        %v598 = vpack.c.b16 %v594, %v594
        %v667 = vunpack.c.l.b16 %v525
        %v668 = vunpack.c.l.b16 %v526
        %v669 = vunpack.c.l.b16 %v527
        %v670 = vunpack.c.l.b16 %v528
        %v671 = vunpack.c.l.b16 %v529
        %v672 = vunpack.c.l.b16 %v530
        %v673 = vunpack.c.l.b16 %v531
        %v674 = vunpack.c.l.b16 %v532
        %v675 = vunpack.c.l.b16 %v533
        %v676 = vunpack.c.l.b16 %v534
        %v677 = vunpack.c.l.b16 %v535
        %v678 = vunpack.c.l.b16 %v536
        %v679 = vunpack.c.l.b16 %v537
        %v680 = vunpack.c.l.b16 %v538
        %v681 = vunpack.c.l.b16 %v539
        %v682 = vunpack.c.l.b16 %v540
        %v683 = vunpack.c.l.b16 %v541
        %v684 = vunpack.c.l.b16 %v542
        %v685 = vunpack.c.l.b16 %v543
        %v686 = vunpack.c.l.b16 %v544
        %v687 = vunpack.c.l.b16 %v545
        %v688 = vunpack.c.l.b16 %v546
        %v689 = vunpack.c.l.b16 %v547
        %v690 = vunpack.c.l.b16 %v548
        %v691 = vunpack.c.l.b16 %v549
        %v692 = vunpack.c.l.b16 %v550
        %v693 = vunpack.c.l.b16 %v551
        %v694 = vunpack.c.l.b16 %v552
        %v695 = vunpack.c.l.b16 %v553
        %v696 = vunpack.c.l.b16 %v554
        %v697 = vunpack.c.l.b16 %v555
        %v698 = vunpack.c.l.b16 %v556
        %v699 = vunpack.c.l.b16 %v557
        %v700 = vunpack.c.l.b16 %v558
        %v701 = vunpack.c.l.b16 %v559
        %v702 = vunpack.c.l.b16 %v560
        %v703 = vunpack.c.l.b16 %v561
        %v704 = vunpack.c.l.b16 %v562
        %v705 = vunpack.c.l.b16 %v563
        %v706 = vunpack.c.l.b16 %v564
        %v707 = vunpack.c.l.b16 %v565
        %v708 = vunpack.c.l.b16 %v566
        %v709 = vunpack.c.l.b16 %v567
        %v710 = vunpack.c.l.b16 %v568
        %v711 = vunpack.c.l.b16 %v569
        %v712 = vunpack.c.l.b16 %v570
        %v713 = vunpack.c.l.b16 %v571
        %v714 = vunpack.c.l.b16 %v572
        %v715 = vunpack.c.l.b16 %v573
        %v716 = vunpack.c.l.b16 %v574
        %v717 = vunpack.c.l.b16 %v575
        %v718 = vunpack.c.l.b16 %v576
        %v719 = vunpack.c.l.b16 %v577
        %v720 = vunpack.c.l.b16 %v578
        %v721 = vunpack.c.l.b16 %v579
        %v722 = vunpack.c.l.b16 %v580
        %v723 = vunpack.c.l.b16 %v581
        %v724 = vunpack.c.l.b16 %v582
        %v725 = vunpack.c.l.b16 %v583
        %v726 = vunpack.c.l.b16 %v584
        %v727 = vunpack.c.l.b16 %v585
        %v728 = vunpack.c.l.b16 %v586
        %v729 = vunpack.c.l.b16 %v587
        %v730 = vunpack.c.l.b16 %v588
        %v731 = vpack.c.b16 %v668, %v667
        %v732 = vpack.c.b16 %v670, %v669
        %v733 = vpack.c.b16 %v672, %v671
        %v734 = vpack.c.b16 %v674, %v673
        %v735 = vpack.c.b16 %v676, %v675
        %v736 = vpack.c.b16 %v678, %v677
        %v737 = vpack.c.b16 %v680, %v679
        %v738 = vpack.c.b16 %v682, %v681
        %v739 = vpack.c.b16 %v684, %v683
        %v740 = vpack.c.b16 %v686, %v685
        %v741 = vpack.c.b16 %v688, %v687
        %v742 = vpack.c.b16 %v690, %v689
        %v743 = vpack.c.b16 %v692, %v691
        %v744 = vpack.c.b16 %v694, %v693
        %v745 = vpack.c.b16 %v696, %v695
        %v746 = vpack.c.b16 %v698, %v697
        %v747 = vpack.c.b16 %v700, %v699
        %v748 = vpack.c.b16 %v702, %v701
        %v749 = vpack.c.b16 %v704, %v703
        %v750 = vpack.c.b16 %v706, %v705
        %v751 = vpack.c.b16 %v708, %v707
        %v752 = vpack.c.b16 %v710, %v709
        %v753 = vpack.c.b16 %v712, %v711
        %v754 = vpack.c.b16 %v714, %v713
        %v755 = vpack.c.b16 %v716, %v715
        %v756 = vpack.c.b16 %v718, %v717
        %v757 = vpack.c.b16 %v720, %v719
        %v758 = vpack.c.b16 %v722, %v721
        %v759 = vpack.c.b16 %v724, %v723
        %v760 = vpack.c.b16 %v726, %v725
        %v761 = vpack.c.b16 %v728, %v727
        %v762 = vpack.c.b16 %v730, %v729
        %795 = vmatprep.subr.bf16.mxu0 0
        %796 = vmatpush1.bf16.msra.mxu0 %v731
        %797 = vmatprep.subr.bf16.mxu0 0
        %798 = vmatpush1.bf16.msra.mxu0 %v732
        %799 = vmatprep.subr.bf16.mxu0 0
        %800 = vmatpush1.bf16.msra.mxu0 %v733
        %801 = vmatprep.subr.bf16.mxu0 0
        %802 = vmatpush1.bf16.msra.mxu0 %v734
        %803 = vmatprep.subr.bf16.mxu0 0
        %804 = vmatpush1.bf16.msra.mxu0 %v735
        %805 = vmatprep.subr.bf16.mxu0 0
        %806 = vmatpush1.bf16.msra.mxu0 %v736
        %807 = vmatprep.subr.bf16.mxu0 0
        %808 = vmatpush1.bf16.msra.mxu0 %v737
        %809 = vmatprep.subr.bf16.mxu0 0
        %810 = vmatpush1.bf16.msra.mxu0 %v738
        %811 = vmatprep.subr.bf16.mxu0 0
        %812 = vmatpush1.bf16.msra.mxu0 %v739
        %813 = vmatprep.subr.bf16.mxu0 0
        %814 = vmatpush1.bf16.msra.mxu0 %v740
        %815 = vmatprep.subr.bf16.mxu0 0
        %816 = vmatpush1.bf16.msra.mxu0 %v741
        %817 = vmatprep.subr.bf16.mxu0 0
        %818 = vmatpush1.bf16.msra.mxu0 %v742
        %819 = vmatprep.subr.bf16.mxu0 0
        %820 = vmatpush1.bf16.msra.mxu0 %v743
        %821 = vmatprep.subr.bf16.mxu0 0
        %822 = vmatpush1.bf16.msra.mxu0 %v744
        %823 = vmatprep.subr.bf16.mxu0 0
        %824 = vmatpush1.bf16.msra.mxu0 %v745
        %825 = vmatprep.subr.bf16.mxu0 0
        %826 = vmatpush1.bf16.msra.mxu0 %v746
        %827 = vmatprep.mubr.bf16.mxu0 %v596
        %828 = vmatmul.mubr.bf16.gmra.mrb[0].mxu0 %v595
        %v829 = vpop.f32.mrb[0].mxu0
        %v830 = vadd.f32 0.0, %v829
        %v831 = vpop.f32.mrb[0].mxu0
        %v832 = vpop.f32.mrb[0].mxu0
        %v833 = vpop.f32.mrb[0].mxu0
        %834 = vdwg.mxu0
        %835 = vmatprep.subr.bf16.mxu0 0
        %836 = vmatpush1.bf16.msra.mxu0 %v747
        %837 = vmatprep.subr.bf16.mxu0 0
        %838 = vmatpush1.bf16.msra.mxu0 %v748
        %839 = vmatprep.subr.bf16.mxu0 0
        %840 = vmatpush1.bf16.msra.mxu0 %v749
        %841 = vmatprep.subr.bf16.mxu0 0
        %842 = vmatpush1.bf16.msra.mxu0 %v750
        %843 = vmatprep.subr.bf16.mxu0 0
        %844 = vmatpush1.bf16.msra.mxu0 %v751
        %845 = vmatprep.subr.bf16.mxu0 0
        %846 = vmatpush1.bf16.msra.mxu0 %v752
        %847 = vmatprep.subr.bf16.mxu0 0
        %848 = vmatpush1.bf16.msra.mxu0 %v753
        %849 = vmatprep.subr.bf16.mxu0 0
        %850 = vmatpush1.bf16.msra.mxu0 %v754
        %851 = vmatprep.subr.bf16.mxu0 0
        %852 = vmatpush1.bf16.msra.mxu0 %v755
        %853 = vmatprep.subr.bf16.mxu0 0
        %854 = vmatpush1.bf16.msra.mxu0 %v756
        %855 = vmatprep.subr.bf16.mxu0 0
        %856 = vmatpush1.bf16.msra.mxu0 %v757
        %857 = vmatprep.subr.bf16.mxu0 0
        %858 = vmatpush1.bf16.msra.mxu0 %v758
        %859 = vmatprep.subr.bf16.mxu0 0
        %860 = vmatpush1.bf16.msra.mxu0 %v759
        %861 = vmatprep.subr.bf16.mxu0 0
        %862 = vmatpush1.bf16.msra.mxu0 %v760
        %863 = vmatprep.subr.bf16.mxu0 0
        %864 = vmatpush1.bf16.msra.mxu0 %v761
        %865 = vmatprep.subr.bf16.mxu0 0
        %866 = vmatpush1.bf16.msra.mxu0 %v762
        %867 = vmatprep.mubr.bf16.mxu0 %v598
        %868 = vmatmul.mubr.bf16.gmra.mrb[0].mxu0 %v597
        %v869 = vpop.f32.mrb[0].mxu0
        %v870 = vadd.f32 %v830, %v869
        %v871 = vpop.f32.mrb[0].mxu0
        %v872 = vpop.f32.mrb[0].mxu0
        %v873 = vpop.f32.mrb[0].mxu0
        %874 = vdwg.mxu0
        %v875 = vadd.f32 %v522, %v870
        %876 = vst [vmem:[#allocation2] sm:$0xff] %v875
        %p877 = scmp.eq.s32.totalorder %s19, 1
        // Predicated region
        $region78: #{rtdetr_forward.2} parent=68 // pred_check
          %p878 = pneg %p877
        $region79: #{rtdetr_forward.2} parent=68 // pred_check_branch
          %880 = sbr.rel (%p878) target = $region81
        $region80: #{rtdetr_forward.2} parent=68 // pred_region
          %v881 = vld [vmem:[#allocation2] sm:$0xff]
          %v882 = vld [vmem:[%s511] sm:$0x1]
          %v884 = vlaneseq
          %v885 = vshrl.u32 %v884, 7
          %v886 = vsub.s32 0, %v885
          %v887 = vrot.slane %v882, %v886
          %v889 = vadd.f32 %v881, %v887
          %v890 = vmax.f32 %v889, 0.0
          %v891 = vpack.c.bf16 %v890, %v890
          %892 = vst [vmem:[%s515] sm:$0xf] %v891
        $region81: #{rtdetr_forward.2} parent=68 // pred_fallthru
          _
        %p893 = scmp.lt.s32.totalorder %s18, 1
        %s894 = scalar_select %p893, %s18, 1
        %s895 = smul.addr %s894, 4
        %s896 = scalar_lea.vmem %s3, %s895
        // Predicated region
        $region82: #{rtdetr_forward.2} parent=68 // pred_check
          %p897 = pneg %p124
        $region83: #{rtdetr_forward.2} parent=68 // pred_check_branch
          %899 = sbr.rel (%p897) target = $region85
        $region84: #{rtdetr_forward.2} parent=68 // pred_region
          _
        $region85: #{rtdetr_forward.2} parent=68 // pred_fallthru
          _
      $region69: #{rtdetr_forward.2} parent=5 // pred_fallthru
        _
      %p900 = scmp.le.s32.totalorder 2, %s9
      // Predicated region
      $region86: #{rtdetr_forward.2} parent=5 // pred_check
        %p901 = pneg %p900
      $region87: #{rtdetr_forward.2} parent=5 // pred_check_branch
        %903 = sbr.rel (%p901) target = $region89
      $region88: #{rtdetr_forward.2} parent=5 // pred_region
        %s904 = ssub.s32 %s9, 2
        // Predicated region
        $region90: #{rtdetr_forward.2} parent=88 // pred_check
          %p905 = pneg %p130
        $region91: #{rtdetr_forward.2} parent=88 // pred_check_branch
          %907 = sbr.rel (%p905) target = $region93
        $region92: #{rtdetr_forward.2} parent=88 // pred_region
          %p908 = scmp.lt.s32.totalorder %s20, 1
          %s909 = scalar_select %p908, %s20, 1
          %s910 = smul.addr %s909, 4
          %s911 = scalar_lea.vmem %s3, %s910
        $region93: #{rtdetr_forward.2} parent=88 // pred_fallthru
          _
      $region89: #{rtdetr_forward.2} parent=5 // pred_fallthru
        _
    $region6: #{rtdetr_forward.2} parent=1 // loop_footer
      %s13 = sadd.s32 1, %s9
    $region7: #{rtdetr_forward.2} parent=1 // loop_footer_branch
      %8 = sbr.rel target = $region3
    $region8: #{rtdetr_forward.2} parent=1 // loop_exit
      _

// kernel: rtdetr_forward.3
$region0: #{rtdetr_forward.3}
  #allocation0 [shape = 'u32[]', space=smem, size = 0x4, offset = 0x4, fixed_abs, tag = 'smem constant byte address 0x4 - core index']
  #allocation1 [shape = 'u32[144,128]{1,0:T(1,128)}', space=vmem, size = 0x12000, scoped, tag = 'internal scratch']
  %s0 = inlined_call_operand.vmem [shape: bf16[16,32], index: 0, kind: input, shape index: {}]
  %s1 = inlined_call_operand.vmem [shape: bf16[32,128], index: 1, kind: input, shape index: {}]
  %s2 = inlined_call_operand.vmem [shape: f32[1,128], index: 2, kind: input, shape index: {}]
  %s3 = inlined_call_operand.vmem [shape: f32[2,2], index: 3, kind: input, shape index: {}]
  %s4 = inlined_call_operand.vmem [shape: f32[16,128], index: 4, kind: output, shape index: {}]
  %s5 = sld [smem:[#allocation0]]
  $region53: #{rtdetr_forward.3} parent=0
    _
  %s7 = ssub.s32 1, %s5
  %s8 = scalar_select 0, %s7, %s5
  $region1: #{rtdetr_forward.3} parent=0
    #allocation2 [shape = 'u8[1024]{0}', space=smem, size = 0x400, scoped, tag = 'input window, operand 3, single buffered']
    #allocation3 [shape = 's32[2]{0}', space=sflag, size = 0x8, scoped, tag = 'scoped memory for rtdetr_forward.3']
    %9 = vsyncpa [#allocation3], 0
    loop: start=0, step=1, limit=4
    $region2: #{rtdetr_forward.3} parent=1 // loop_pre_header
      _
    $region3: #{rtdetr_forward.3} parent=1 // loop_header
      %s11 = sphi 0, %s15
      %p12 = scmp.ge.s32.totalorder %s11, 4
      %s21 = sphi 0, %s23
      %s24 = sphi 0, %s21
      %s25 = sphi 0, %s24
      %s41 = sphi 0, %s25
      %s45 = sphi 0, %s45
      %s47 = sphi 0, %s45
      %s48 = sphi 0, %s47
      %s62 = sphi 0, %s48
      %s66 = sphi 0, %s66
      %s68 = sphi 0, %s66
      %s69 = sphi 0, %s68
      %s83 = sphi 0, %s69
      %s87 = sphi 0, %s87
      %s89 = sphi 0, %s87
      %s90 = sphi 0, %s89
      %s104 = sphi 0, %s90
      %s110 = sphi 0, %s112
      %s113 = sphi 0, %s110
      %s114 = sphi 0, %s113
      %s130 = sphi 0, %s114
    $region4: #{rtdetr_forward.3} parent=1 // loop_header_branch
      %14 = sbr.rel (%p12) target = $region8
    $region5: #{rtdetr_forward.3} parent=1 // loop_body
      %s16 = ssub.s32 %s11, 1
      %s17 = ssub.s32 %s11, 2
      %s18 = sadd.s32 %s11, 1
      %s19 = ssub.s32 %s11, %s18
      %p20 = scmp.eq.s32.totalorder %s19, 0
      %s22 = sadd.s32 %s21, 1
      %s23 = scalar_select %p20, %s21, %s22
      %p26 = pneg %p20
      %p27 = scmp.eq.s32.totalorder %s11, 1
      %p28 = por %p26, %p27
      %p29 = scmp.ne.s32.totalorder %s21, %s24
      %p30 = scmp.eq.s32.totalorder %s11, 0
      %p31 = por %p29, %p30
      %p32 = scmp.ne.s32.totalorder %s21, %s24
      %p33 = scmp.eq.s32.totalorder %s16, 1
      %p34 = por %p32, %p33
      %p35 = scmp.ne.s32.totalorder %s24, %s25
      %p36 = scmp.eq.s32.totalorder %s16, 0
      %p37 = por %p35, %p36
      %p38 = scmp.ne.s32.totalorder %s24, %s25
      %p39 = scmp.eq.s32.totalorder %s17, 1
      %p40 = por %p38, %p39
      %p42 = scmp.ne.s32.totalorder %s25, %s41
      %p43 = scmp.eq.s32.totalorder %s17, 0
      %p44 = por %p42, %p43
      %s46 = sadd.s32 %s45, 1
      %p49 = scmp.eq.s32.totalorder %s11, 1
      %p50 = scmp.ne.s32.totalorder %s45, %s47
      %p51 = scmp.eq.s32.totalorder %s11, 0
      %p52 = por %p50, %p51
      %p53 = scmp.ne.s32.totalorder %s45, %s47
      %p54 = scmp.eq.s32.totalorder %s16, 1
      %p55 = por %p53, %p54
      %p56 = scmp.ne.s32.totalorder %s47, %s48
      %p57 = scmp.eq.s32.totalorder %s16, 0
      %p58 = por %p56, %p57
      %p59 = scmp.ne.s32.totalorder %s47, %s48
      %p60 = scmp.eq.s32.totalorder %s17, 1
      %p61 = por %p59, %p60
      %p63 = scmp.ne.s32.totalorder %s48, %s62
      %p64 = scmp.eq.s32.totalorder %s17, 0
      %p65 = por %p63, %p64
      %s67 = sadd.s32 %s66, 1
      %p70 = scmp.eq.s32.totalorder %s11, 1
      %p71 = scmp.ne.s32.totalorder %s66, %s68
      %p72 = scmp.eq.s32.totalorder %s11, 0
      %p73 = por %p71, %p72
      %p74 = scmp.ne.s32.totalorder %s66, %s68
      %p75 = scmp.eq.s32.totalorder %s16, 1
      %p76 = por %p74, %p75
      %p77 = scmp.ne.s32.totalorder %s68, %s69
      %p78 = scmp.eq.s32.totalorder %s16, 0
      %p79 = por %p77, %p78
      %p80 = scmp.ne.s32.totalorder %s68, %s69
      %p81 = scmp.eq.s32.totalorder %s17, 1
      %p82 = por %p80, %p81
      %p84 = scmp.ne.s32.totalorder %s69, %s83
      %p85 = scmp.eq.s32.totalorder %s17, 0
      %p86 = por %p84, %p85
      %s88 = sadd.s32 %s87, 1
      %p91 = scmp.eq.s32.totalorder %s11, 1
      %p92 = scmp.ne.s32.totalorder %s87, %s89
      %p93 = scmp.eq.s32.totalorder %s11, 0
      %p94 = por %p92, %p93
      %p95 = scmp.ne.s32.totalorder %s87, %s89
      %p96 = scmp.eq.s32.totalorder %s16, 1
      %p97 = por %p95, %p96
      %p98 = scmp.ne.s32.totalorder %s89, %s90
      %p99 = scmp.eq.s32.totalorder %s16, 0
      %p100 = por %p98, %p99
      %p101 = scmp.ne.s32.totalorder %s89, %s90
      %p102 = scmp.eq.s32.totalorder %s17, 1
      %p103 = por %p101, %p102
      %p105 = scmp.ne.s32.totalorder %s90, %s104
      %p106 = scmp.eq.s32.totalorder %s17, 0
      %p107 = por %p105, %p106
      %s108 = ssub.s32 %s11, %s18
      %p109 = scmp.eq.s32.totalorder %s108, 0
      %s111 = sadd.s32 %s110, 1
      %s112 = scalar_select %p109, %s110, %s111
      %p115 = pneg %p109
      %p116 = scmp.eq.s32.totalorder %s11, 1
      %p117 = por %p115, %p116
      %p118 = scmp.ne.s32.totalorder %s110, %s113
      %p119 = scmp.eq.s32.totalorder %s11, 0
      %p120 = por %p118, %p119
      %p121 = scmp.ne.s32.totalorder %s110, %s113
      %p122 = scmp.eq.s32.totalorder %s16, 1
      %p123 = por %p121, %p122
      %p124 = scmp.ne.s32.totalorder %s113, %s114
      %p125 = scmp.eq.s32.totalorder %s16, 0
      %p126 = por %p124, %p125
      %p127 = scmp.ne.s32.totalorder %s113, %s114
      %p128 = scmp.eq.s32.totalorder %s17, 1
      %p129 = por %p127, %p128
      %p131 = scmp.ne.s32.totalorder %s114, %s130
      %p132 = scmp.eq.s32.totalorder %s17, 0
      %p133 = por %p131, %p132
      %p134 = scmp.le.s32.totalorder 1, %s11
      %p135 = scmp.lt.s32.totalorder %s11, 3
      %p136 = pnand %p134, %p135
      %p137 = pneg %p136
      // Predicated region
      $region9: #{rtdetr_forward.3} parent=5 // pred_check
        _
      $region10: #{rtdetr_forward.3} parent=5 // pred_check_branch
        %139 = sbr.rel (%p136) target = $region12
      $region11: #{rtdetr_forward.3} parent=5 // pred_region
        %s140 = ssub.s32 %s11, 1
        // Predicated region
        $region13: #{rtdetr_forward.3} parent=11 // pred_check
          %p141 = pneg %p58
        $region14: #{rtdetr_forward.3} parent=11 // pred_check_branch
          %143 = sbr.rel (%p141) target = $region16
        $region15: #{rtdetr_forward.3} parent=11 // pred_region
          _
        $region16: #{rtdetr_forward.3} parent=11 // pred_fallthru
          _
        // Predicated region
        $region17: #{rtdetr_forward.3} parent=11 // pred_check
          %p144 = pneg %p79
        $region18: #{rtdetr_forward.3} parent=11 // pred_check_branch
          %146 = sbr.rel (%p144) target = $region20
        $region19: #{rtdetr_forward.3} parent=11 // pred_region
          _
        $region20: #{rtdetr_forward.3} parent=11 // pred_fallthru
          _
        // Predicated region
        $region21: #{rtdetr_forward.3} parent=11 // pred_check
          %p147 = pneg %p100
        $region22: #{rtdetr_forward.3} parent=11 // pred_check_branch
          %149 = sbr.rel (%p147) target = $region24
        $region23: #{rtdetr_forward.3} parent=11 // pred_region
          %s151 = ssub.s32 32, 32
          %152 = vsyncadd [#allocation3], %s151
          %s154 = sshll.u32 %s3, 4
          %s155 = int_to_ptr.vmem [resolvable:$true] %s154
          %157 = dma.vmem_to_smem %s155, 32, [#allocation2], [#allocation3]
        $region24: #{rtdetr_forward.3} parent=11 // pred_fallthru
          _
      $region12: #{rtdetr_forward.3} parent=5 // pred_fallthru
        _
      %p158 = scmp.lt.s32.totalorder %s11, 2
      // Predicated region
      $region25: #{rtdetr_forward.3} parent=5 // pred_check
        %p159 = pneg %p158
      $region26: #{rtdetr_forward.3} parent=5 // pred_check_branch
        %161 = sbr.rel (%p159) target = $region28
      $region27: #{rtdetr_forward.3} parent=5 // pred_region
        // Predicated region
        $region29: #{rtdetr_forward.3} parent=27 // pred_check
          %p162 = pneg %p31
        $region30: #{rtdetr_forward.3} parent=27 // pred_check_branch
          %164 = sbr.rel (%p162) target = $region32
        $region31: #{rtdetr_forward.3} parent=27 // pred_region
          %p165 = scmp.lt.s32.totalorder %s11, 1
          %s166 = scalar_select %p165, %s11, 1
          %s167 = smul.addr %s166, 4
          %s168 = scalar_lea.vmem %s0, %s167
        $region32: #{rtdetr_forward.3} parent=27 // pred_fallthru
          _
      $region28: #{rtdetr_forward.3} parent=5 // pred_fallthru
        _
      %p169 = scmp.le.s32.totalorder 1, %s11
      %p170 = scmp.lt.s32.totalorder %s11, 3
      %p171 = pnand %p169, %p170
      %p172 = pneg %p171
      // Predicated region
      $region33: #{rtdetr_forward.3} parent=5 // pred_check
        _
      $region34: #{rtdetr_forward.3} parent=5 // pred_check_branch
        %174 = sbr.rel (%p171) target = $region36
      $region35: #{rtdetr_forward.3} parent=5 // pred_region
        %s175 = ssub.s32 %s11, 1
        // Predicated region
        $region37: #{rtdetr_forward.3} parent=35 // pred_check
          %p176 = pneg %p100
        $region38: #{rtdetr_forward.3} parent=35 // pred_check_branch
          %178 = sbr.rel (%p176) target = $region40
        $region39: #{rtdetr_forward.3} parent=35 // pred_region
          %179 = dma.done [#allocation3], 32
        $region40: #{rtdetr_forward.3} parent=35 // pred_fallthru
          _
        %180 = sfence
        %p181 = scmp.lt.s32.totalorder %s16, 1
        %s182 = scalar_select %p181, %s16, 1
        %s183 = smul.addr %s182, 4
        %s184 = scalar_lea.vmem %s0, %s183
        %p185 = pneg %p37
        %p186 = pneg %p34
        %p187 = pneg %p58
        %p188 = pneg %p55
        %p189 = pneg %p79
        %p190 = pneg %p76
        %p191 = pneg %p100
        %p192 = pneg %p97
        %p193 = pneg %p126
        %p194 = pneg %p123
        %p195 = scmp.lt.s32.totalorder %s16, 1
        %s196 = scalar_select %p195, %s16, 1
        %s197 = smul.addr %s196, 8
        %s198 = scalar_lea.vmem %s4, %s197
        %p199 = scmp.lt.s32.totalorder %s16, 1
        %s200 = scalar_select %p199, %s16, 1
        %s201 = smul.addr %s200, 4
        %s202 = scalar_lea.vmem %s0, %s201
        %p203 = scmp.lt.s32.totalorder %s16, 1
        %s204 = scalar_select %p203, %s16, 1
        %s205 = smul.addr %s204, 8
        %s206 = scalar_lea.vmem %s4, %s205
        %v208 = vld [vmem:[%s202] sm:$0xf]
        %v209 = vld [vmem:[%s1] sm:$0xf]
        %v210 = vld [vmem:[%s1 + $0x4] sm:$0xf]
        %v211 = vld [vmem:[%s1 + $0x8] sm:$0xf]
        %v212 = vld [vmem:[%s1 + $0xc] sm:$0xf]
        %v213 = vld [vmem:[%s2] sm:$0x1]
        %v215 = vlaneseq
        %v216 = vshrl.u32 %v215, 7
        %v217 = vsub.s32 0, %v216
        %v218 = vrot.slane %v213, %v217
        %v224 = vunpack.c.l.b16 %v209
        %v225 = vunpack.c.l.b16 %v210
        %v226 = vunpack.c.l.b16 %v211
        %v227 = vunpack.c.l.b16 %v212
        %v228 = vpack.c.b16 %v225, %v224
        %v229 = vpack.c.b16 %v227, %v226
        %vm232 = vcmask 261120
        %v234 = vsel %vm232, %v208, 0
        %236 = vmatprep.subr.bf16.mxu0 0
        %237 = vmatpush1.bf16.msra.mxu0 %v228
        %238 = vmatprep.subr.bf16.mxu0 0
        %239 = vmatpush1.bf16.msra.mxu0 %v229
        %240 = vmatprep.subr.bf16.mxu0 0
        %241 = vmatpush1.bf16.msra.mxu0 0
        %242 = vmatprep.subr.bf16.mxu0 0
        %243 = vmatpush1.bf16.msra.mxu0 0
        %244 = vmatprep.subr.bf16.mxu0 0
        %245 = vmatpush1.bf16.msra.mxu0 0
        %246 = vmatprep.subr.bf16.mxu0 0
        %247 = vmatpush1.bf16.msra.mxu0 0
        %248 = vmatprep.subr.bf16.mxu0 0
        %249 = vmatpush1.bf16.msra.mxu0 0
        %250 = vmatprep.subr.bf16.mxu0 0
        %251 = vmatpush1.bf16.msra.mxu0 0
        %252 = vmatprep.subr.bf16.mxu0 0
        %253 = vmatpush1.bf16.msra.mxu0 0
        %254 = vmatprep.subr.bf16.mxu0 0
        %255 = vmatpush1.bf16.msra.mxu0 0
        %256 = vmatprep.subr.bf16.mxu0 0
        %257 = vmatpush1.bf16.msra.mxu0 0
        %258 = vmatprep.subr.bf16.mxu0 0
        %259 = vmatpush1.bf16.msra.mxu0 0
        %260 = vmatprep.subr.bf16.mxu0 0
        %261 = vmatpush1.bf16.msra.mxu0 0
        %262 = vmatprep.subr.bf16.mxu0 0
        %263 = vmatpush1.bf16.msra.mxu0 0
        %264 = vmatprep.subr.bf16.mxu0 0
        %265 = vmatpush1.bf16.msra.mxu0 0
        %266 = vmatprep.subr.bf16.mxu0 0
        %267 = vmatpush1.bf16.msra.mxu0 0
        %268 = vmatprep.mubr.bf16.mxu0 0
        %269 = vmatmul.mubr.bf16.gmra.mrb[0].mxu0 %v234
        %v270 = vpop.f32.mrb[0].mxu0
        %v271 = vadd.f32 %v218, %v270
        %v272 = vpop.f32.mrb[0].mxu0
        %v273 = vpop.f32.mrb[0].mxu0
        %v274 = vpop.f32.mrb[0].mxu0
        %275 = vdwg.mxu0
        %v276 = vxor.u32 %v271, 2147483648
        %v277 = vmul.f32 %v276, 1.442695
        %v278 = vpow.pop %v277
        %v279 = vadd.f32 %v278, 1.0
        %v280 = vrcp.pop %v279
        %v281 = vmul.f32 1.0, %v280
        %s282 = smul.u32 %s16, 128
        %s283 = sld [smem:[#allocation2 + %s282]]
        %s284 = sadd.s32 %s282, 1
        %s285 = sld [smem:[#allocation2 + %s284]]
        %v286 = vmul.f32 %v281, 0.5
        %288 = vrot.lane.b32.xlu0 %v286, 126
        %v289 = vpop.permute.xlu0 %288
        %v291 = vsub.f32 %v281, %v289
        %v292 = vstv %s283
        %v293 = vmul.f32 %v291, %v292
        %v294 = vstv %s285
        %v295 = vmul.f32 %v291, %v294
        %v296 = vadd.f32 %v281, %v289
        %v297 = vmul.f32 %v296, %v292
        %v298 = vmul.f32 %v296, %v294
        %v299 = vlaneseq
        %v300 = vand.u32 %v299, 127
        %vm301 = vcmp.eq.s32.totalorder %v300, 0
        %vm302 = vcmp.eq.s32.totalorder %v300, 1
        %vm303 = vcmp.eq.s32.totalorder %v300, 2
        %305 = vset.pattern.permute.xlu0 0
        %306 = vperm.xlu0 %305, %v297
        %v307 = vpop.permute.xlu0 %306
        %310 = vset.pattern.permute.xlu0 1
        %311 = vperm.xlu0 %310, %v298
        %v312 = vpop.permute.xlu0 %311
        %v314 = vsel %vm303, %v307, %v312
        %316 = vset.pattern.permute.xlu0 1
        %317 = vperm.xlu0 %316, %v295
        %v318 = vpop.permute.xlu0 %317
        %v320 = vsel %vm302, %v318, %v314
        %322 = vset.pattern.permute.xlu0 0
        %323 = vperm.xlu0 %322, %v293
        %v324 = vpop.permute.xlu0 %323
        %v326 = vsel %vm301, %v324, %v320
        %vm327 = vcmp.lt.s32.totalorder %v300, 4
        %v328 = vsel %vm327, %v326, %v281
        %329 = vst [vmem:[%s206] sm:$0xff] %v328
        %p330 = scmp.lt.s32.totalorder %s16, 1
        %s331 = scalar_select %p330, %s16, 1
        %s332 = smul.addr %s331, 8
        %s333 = scalar_lea.vmem %s4, %s332
        // Predicated region
        $region41: #{rtdetr_forward.3} parent=35 // pred_check
          %p334 = pneg %p123
        $region42: #{rtdetr_forward.3} parent=35 // pred_check_branch
          %336 = sbr.rel (%p334) target = $region44
        $region43: #{rtdetr_forward.3} parent=35 // pred_region
          _
        $region44: #{rtdetr_forward.3} parent=35 // pred_fallthru
          _
      $region36: #{rtdetr_forward.3} parent=5 // pred_fallthru
        _
      %p337 = scmp.le.s32.totalorder 2, %s11
      // Predicated region
      $region45: #{rtdetr_forward.3} parent=5 // pred_check
        %p338 = pneg %p337
      $region46: #{rtdetr_forward.3} parent=5 // pred_check_branch
        %340 = sbr.rel (%p338) target = $region48
      $region47: #{rtdetr_forward.3} parent=5 // pred_region
        %s341 = ssub.s32 %s11, 2
        // Predicated region
        $region49: #{rtdetr_forward.3} parent=47 // pred_check
          %p342 = pneg %p129
        $region50: #{rtdetr_forward.3} parent=47 // pred_check_branch
          %344 = sbr.rel (%p342) target = $region52
        $region51: #{rtdetr_forward.3} parent=47 // pred_region
          %p345 = scmp.lt.s32.totalorder %s17, 1
          %s346 = scalar_select %p345, %s17, 1
          %s347 = smul.addr %s346, 8
          %s348 = scalar_lea.vmem %s4, %s347
        $region52: #{rtdetr_forward.3} parent=47 // pred_fallthru
          _
      $region48: #{rtdetr_forward.3} parent=5 // pred_fallthru
        _
    $region6: #{rtdetr_forward.3} parent=1 // loop_footer
      %s15 = sadd.s32 1, %s11
    $region7: #{rtdetr_forward.3} parent=1 // loop_footer_branch
      %10 = sbr.rel target = $region3
    $region8: #{rtdetr_forward.3} parent=1 // loop_exit
      _
    %349 = vsyncpa [#allocation3], 1
    %s350 = scalar_lea.sflag [#allocation3], 1
    %351 = vsyncpa %s350, 1

</llo_original>
